<compile_context>
chip_gen: v7x
topology: tpu7x:2x2x1
jax: 0.10.0
libtpu: 0.0.40
codegen_flags: <defaults>
</compile_context>

<pallas_src>
import numpy as np
import jax
import jax.numpy as jnp
from jax.experimental import pallas as pl
from jax.experimental.pallas import tpu as pltpu


def _fff_constants(B, C, H, W):
    """Dense DFT constants (float64 numpy) with the ortho scales folded in."""
    V = W // 2 + 1
    P = B * C
    s_fwd = 1.0 / np.sqrt(H * W)            # rfftn ortho over dims (2, 3)
    s_inv = 1.0 / np.sqrt(B * C * H * W)    # irfftn ortho over ALL dims

    h = np.arange(H)
    w = np.arange(W)
    v = np.arange(V)

    # H-direction forward DFT (left multiply): T = FH @ X,  FH[k, h] = exp(-2i*pi*k*h/H).
    # The inverse along H reuses these matrices: GH = conj(FH) -> GHr = fhr, GHi = -fhi.
    ang_hh = 2.0 * np.pi * np.outer(h, h) / H
    fhr = np.cos(ang_hh)                                    # (H, H)
    fhi = -np.sin(ang_hh)                                   # (H, H)

    # W-direction rfft as a lane-block-diagonal RIGHT multiply on the lane-stacked data:
    #   A[:, p*V + kv] = s_fwd * sum_w T[:, p*W + w] * exp(-2i*pi*kv*w/W)
    ang_wv = 2.0 * np.pi * np.outer(w, v) / W               # (W, V)
    fwc = np.cos(ang_wv) * s_fwd
    fws = -np.sin(ang_wv) * s_fwd
    bdc = np.zeros((P * W, P * V))
    bds = np.zeros((P * W, P * V))
    for p in range(P):
        bdc[p * W:(p + 1) * W, p * V:(p + 1) * V] = fwc
        bds[p * W:(p + 1) * W, p * V:(p + 1) * V] = fws

    # Hermitian fold C2R along W (V complex -> W real), unscaled:
    #   out = Zr @ gc + Zi @ gs
    mult = np.full((V,), 2.0)
    mult[0] = 1.0
    if W % 2 == 0:
        mult[-1] = 1.0
    ang_vw = 2.0 * np.pi * np.outer(v, w) / W               # (V, W)
    gc = mult[:, None] * np.cos(ang_vw)
    gs = -mult[:, None] * np.sin(ang_vw)

    # Inverse DFT over (B, C) (the extra axes of irfftn over ALL dims), fused directly
    # into the C2R constant so the cross-slab mix is a single pair of matmuls:
    #   out[:, po*W + w'] = sum_{pi,kv} Zr[:, pi*V+kv] * BIGr[pi*V+kv, po*W+w']
    #                                 + Zi[:, pi*V+kv] * BIGi[pi*V+kv, po*W+w']
    kb = np.exp(2j * np.pi * np.outer(np.arange(B), np.arange(B)) / B)
    kc = np.exp(2j * np.pi * np.outer(np.arange(C), np.arange(C)) / C)
    K = np.kron(kb, kc)                                     # (P, P): K[po, pi]
    bigr = np.zeros((P * V, P * W))
    bigi = np.zeros((P * V, P * W))
    for po in range(P):
        for pi_ in range(P):
            kr = K[po, pi_].real
            ki = K[po, pi_].imag
            bigr[pi_ * V:(pi_ + 1) * V, po * W:(po + 1) * W] = s_inv * (kr * gc + ki * gs)
            bigi[pi_ * V:(pi_ + 1) * V, po * W:(po + 1) * W] = s_inv * (kr * gs - ki * gc)

    return fhr, fhi, bdc, bds, bigr, bigi


def _fff_kernel(x_ref, w_ref, fhr_ref, fhi_ref, bdc_ref, bds_ref,
                bigr_ref, bigi_ref, o_ref):
    f32 = jnp.float32
    dot = lambda a, b: jnp.dot(a, b, preferred_element_type=f32)

    x_ls = x_ref[...]            # (H, P*W)  real input, slabs lane-stacked
    fhr = fhr_ref[...]           # (H, H)    Re exp(-2i*pi*k*h/H)
    fhi = fhi_ref[...]           # (H, H)    Im exp(-2i*pi*k*h/H)

    # ---- forward FFT along H (left multiply), batched over all 8 slabs at once -------
    tr = dot(fhr, x_ls)          # (H, P*W)
    ti = dot(fhi, x_ls)          # (H, P*W)

    # ---- forward rfft along W (lane-block-diagonal right multiply), fwd scale folded --
    bdc = bdc_ref[...]           # (P*W, P*V)
    bds = bds_ref[...]           # (P*W, P*V)
    ar = dot(tr, bdc) - dot(ti, bds)        # (H, P*V)  Re of rfft2 spectrum
    ai = dot(tr, bds) + dot(ti, bdc)        # (H, P*V)  Im of rfft2 spectrum

    # ---- per-channel real weight: einsum('bchw,chw->bchw') ---------------------------
    w_ls = w_ref[...]            # (H, P*V)  weight broadcast to all slabs on the host
    yr = ar * w_ls
    yi = ai * w_ls

    # ---- inverse FFT along H: GH = conj(FH) -> reuse fhr / -fhi -----------------------
    zr = dot(fhr, yr) + dot(fhi, yi)        # (H, P*V)
    zi = dot(fhr, yi) - dot(fhi, yr)        # (H, P*V)

    # ---- fused inverse DFT over (B, C) + Hermitian C2R along W, inv scale folded ------
    o_ref[...] = dot(zr, bigr_ref[...]) + dot(zi, bigi_ref[...])   # (H, P*W) lane-dense


@jax.jit
def fff_forward(x, weight):
    """x: (B, C, H, W) float32 with H = W = 36, weight: (C, 36, 19) float32."""
    B, C, H, W = x.shape
    V = W // 2 + 1
    assert weight.shape == (C, H, V)
    P = B * C

    fhr, fhi, bdc, bds, bigr, bigi = _fff_constants(B, C, H, W)
    f32 = lambda a: jnp.asarray(a, dtype=jnp.float32)

    # lane-stacked input: x_ls[h, p*W + w] = x[b, c, h, w],  p = b*C + c  (tiny XLA transpose)
    x_ls = jnp.transpose(x.astype(jnp.float32).reshape(P, H, W), (1, 0, 2)).reshape(H, P * W)
    # lane-stacked weight: w_ls[kh, p*V + kv] = weight[p % C, kh, kv]
    w_ls = jnp.tile(
        jnp.transpose(weight.astype(jnp.float32), (1, 0, 2)).reshape(H, C * V), (1, B))

    operands = [x_ls, w_ls, f32(fhr), f32(fhi), f32(bdc), f32(bds), f32(bigr), f32(bigi)]

    def _spec(shape):
        return pl.BlockSpec(tuple(shape), lambda i, _r=len(shape): (0,) * _r)

    out_ls = pl.pallas_call(
        _fff_kernel,
        out_shape=jax.ShapeDtypeStruct((H, P * W), jnp.float32),
        grid=(1,),
        in_specs=[_spec(op.shape) for op in operands],
        out_specs=_spec((H, P * W)),
        compiler_params=pltpu.CompilerParams(dimension_semantics=("arbitrary",)),
    )(*operands)

    # back to (B, C, H, W)
    return jnp.transpose(out_ls.reshape(H, P, W), (1, 0, 2)).reshape(B, C, H, W)


if __name__ == "__main__":
    key = jax.random.PRNGKey(0)
    kx, kw = jax.random.split(key)

    # weight shape (channels, 36, 19) forces the spatial dims: H = W = 36.
    B, C, H, W = 2, 4, 36, 36
    x = jax.random.normal(kx, (B, C, H, W), dtype=jnp.float32)
    weight = jax.random.normal(kw, (C, H, W // 2 + 1), dtype=jnp.float32)

    out = jax.block_until_ready(fff_forward(x, weight))

    # numpy float64 reference with the exact torch.fft semantics:
    #   rfftn over dims (2,3), real-weight einsum, irfftn over ALL dims (ortho).
    x_np = np.asarray(x, dtype=np.float64)
    w_np = np.asarray(weight, dtype=np.float64)
    xf = np.fft.rfftn(x_np, axes=(2, 3), norm='ortho')
    yf = xf * w_np[None]
    ref = np.fft.irfftn(yf, norm='ortho')

    assert out.shape == ref.shape == (B, C, H, W)
    np.testing.assert_allclose(np.asarray(out), ref, rtol=2e-3, atol=2e-3)
    print("KERNEL_OK")
</pallas_src>

<mosaic_0001>
module attributes {stable_mosaic.version = 11 : i64} {
  func.func @_fff_kernel(%arg0: i32, %arg1: memref<36x288xf32, #tpu.memory_space<vmem>>, %arg2: memref<36x152xf32, #tpu.memory_space<vmem>>, %arg3: memref<36x36xf32, #tpu.memory_space<vmem>>, %arg4: memref<36x36xf32, #tpu.memory_space<vmem>>, %arg5: memref<288x152xf32, #tpu.memory_space<vmem>>, %arg6: memref<288x152xf32, #tpu.memory_space<vmem>>, %arg7: memref<152x288xf32, #tpu.memory_space<vmem>>, %arg8: memref<152x288xf32, #tpu.memory_space<vmem>>, %arg9: memref<36x288xf32, #tpu.memory_space<vmem>>) attributes {dimension_semantics = [#tpu.dimension_semantics<arbitrary>], iteration_bounds = array<i64: 1>, scalar_prefetch = 0 : i64, scratch_operands = 0 : i64, tpu.core_type = #tpu.core_type<tc>, window_params = [{pipeline_mode = #tpu.pipeline_mode<synchronous>, transform_indices = @transform_0, window_bounds = array<i64: 36, 288>}, {pipeline_mode = #tpu.pipeline_mode<synchronous>, transform_indices = @transform_1, window_bounds = array<i64: 36, 152>}, {pipeline_mode = #tpu.pipeline_mode<synchronous>, transform_indices = @transform_2, window_bounds = array<i64: 36, 36>}, {pipeline_mode = #tpu.pipeline_mode<synchronous>, transform_indices = @transform_3, window_bounds = array<i64: 36, 36>}, {pipeline_mode = #tpu.pipeline_mode<synchronous>, transform_indices = @transform_4, window_bounds = array<i64: 288, 152>}, {pipeline_mode = #tpu.pipeline_mode<synchronous>, transform_indices = @transform_5, window_bounds = array<i64: 288, 152>}, {pipeline_mode = #tpu.pipeline_mode<synchronous>, transform_indices = @transform_6, window_bounds = array<i64: 152, 288>}, {pipeline_mode = #tpu.pipeline_mode<synchronous>, transform_indices = @transform_7, window_bounds = array<i64: 152, 288>}, {pipeline_mode = #tpu.pipeline_mode<synchronous>, transform_indices = @transform_8, window_bounds = array<i64: 36, 288>}]} {
    %c0 = arith.constant 0 : index
    %c0_0 = arith.constant 0 : index
    %0 = vector.load %arg1[%c0, %c0_0] : memref<36x288xf32, #tpu.memory_space<vmem>>, vector<36x288xf32>
    %c0_1 = arith.constant 0 : index
    %c0_2 = arith.constant 0 : index
    %1 = vector.load %arg3[%c0_1, %c0_2] : memref<36x36xf32, #tpu.memory_space<vmem>>, vector<36x36xf32>
    %c0_3 = arith.constant 0 : index
    %c0_4 = arith.constant 0 : index
    %2 = vector.load %arg4[%c0_3, %c0_4] : memref<36x36xf32, #tpu.memory_space<vmem>>, vector<36x36xf32>
    %cst = arith.constant dense<0.000000e+00> : vector<36x288xf32>
    %3 = tpu.matmul %1, %0, %cst {dimension_numbers = #tpu.dot_dimension_numbers<[1], [0], [0], [1], [0, 0, 1, 1], [], []>} : vector<36x36xf32>, vector<36x288xf32>, vector<36x288xf32> -> vector<36x288xf32>
    %cst_5 = arith.constant dense<0.000000e+00> : vector<36x288xf32>
    %4 = tpu.matmul %2, %0, %cst_5 {dimension_numbers = #tpu.dot_dimension_numbers<[1], [0], [0], [1], [0, 0, 1, 1], [], []>} : vector<36x36xf32>, vector<36x288xf32>, vector<36x288xf32> -> vector<36x288xf32>
    %c0_6 = arith.constant 0 : index
    %c0_7 = arith.constant 0 : index
    %5 = vector.load %arg5[%c0_6, %c0_7] : memref<288x152xf32, #tpu.memory_space<vmem>>, vector<288x152xf32>
    %c0_8 = arith.constant 0 : index
    %c0_9 = arith.constant 0 : index
    %6 = vector.load %arg6[%c0_8, %c0_9] : memref<288x152xf32, #tpu.memory_space<vmem>>, vector<288x152xf32>
    %cst_10 = arith.constant dense<0.000000e+00> : vector<36x152xf32>
    %7 = tpu.matmul %3, %5, %cst_10 {dimension_numbers = #tpu.dot_dimension_numbers<[1], [0], [0], [1], [0, 0, 1, 1], [], []>} : vector<36x288xf32>, vector<288x152xf32>, vector<36x152xf32> -> vector<36x152xf32>
    %cst_11 = arith.constant dense<0.000000e+00> : vector<36x152xf32>
    %8 = tpu.matmul %4, %6, %cst_11 {dimension_numbers = #tpu.dot_dimension_numbers<[1], [0], [0], [1], [0, 0, 1, 1], [], []>} : vector<36x288xf32>, vector<288x152xf32>, vector<36x152xf32> -> vector<36x152xf32>
    %9 = arith.subf %7, %8 : vector<36x152xf32>
    %cst_12 = arith.constant dense<0.000000e+00> : vector<36x152xf32>
    %10 = tpu.matmul %3, %6, %cst_12 {dimension_numbers = #tpu.dot_dimension_numbers<[1], [0], [0], [1], [0, 0, 1, 1], [], []>} : vector<36x288xf32>, vector<288x152xf32>, vector<36x152xf32> -> vector<36x152xf32>
    %cst_13 = arith.constant dense<0.000000e+00> : vector<36x152xf32>
    %11 = tpu.matmul %4, %5, %cst_13 {dimension_numbers = #tpu.dot_dimension_numbers<[1], [0], [0], [1], [0, 0, 1, 1], [], []>} : vector<36x288xf32>, vector<288x152xf32>, vector<36x152xf32> -> vector<36x152xf32>
    %12 = arith.addf %10, %11 : vector<36x152xf32>
    %c0_14 = arith.constant 0 : index
    %c0_15 = arith.constant 0 : index
    %13 = vector.load %arg2[%c0_14, %c0_15] : memref<36x152xf32, #tpu.memory_space<vmem>>, vector<36x152xf32>
    %14 = arith.mulf %9, %13 : vector<36x152xf32>
    %15 = arith.mulf %12, %13 : vector<36x152xf32>
    %cst_16 = arith.constant dense<0.000000e+00> : vector<36x152xf32>
    %16 = tpu.matmul %1, %14, %cst_16 {dimension_numbers = #tpu.dot_dimension_numbers<[1], [0], [0], [1], [0, 0, 1, 1], [], []>} : vector<36x36xf32>, vector<36x152xf32>, vector<36x152xf32> -> vector<36x152xf32>
    %cst_17 = arith.constant dense<0.000000e+00> : vector<36x152xf32>
    %17 = tpu.matmul %2, %15, %cst_17 {dimension_numbers = #tpu.dot_dimension_numbers<[1], [0], [0], [1], [0, 0, 1, 1], [], []>} : vector<36x36xf32>, vector<36x152xf32>, vector<36x152xf32> -> vector<36x152xf32>
    %18 = arith.addf %16, %17 : vector<36x152xf32>
    %cst_18 = arith.constant dense<0.000000e+00> : vector<36x152xf32>
    %19 = tpu.matmul %1, %15, %cst_18 {dimension_numbers = #tpu.dot_dimension_numbers<[1], [0], [0], [1], [0, 0, 1, 1], [], []>} : vector<36x36xf32>, vector<36x152xf32>, vector<36x152xf32> -> vector<36x152xf32>
    %cst_19 = arith.constant dense<0.000000e+00> : vector<36x152xf32>
    %20 = tpu.matmul %2, %14, %cst_19 {dimension_numbers = #tpu.dot_dimension_numbers<[1], [0], [0], [1], [0, 0, 1, 1], [], []>} : vector<36x36xf32>, vector<36x152xf32>, vector<36x152xf32> -> vector<36x152xf32>
    %21 = arith.subf %19, %20 : vector<36x152xf32>
    %c0_20 = arith.constant 0 : index
    %c0_21 = arith.constant 0 : index
    %22 = vector.load %arg7[%c0_20, %c0_21] : memref<152x288xf32, #tpu.memory_space<vmem>>, vector<152x288xf32>
    %cst_22 = arith.constant dense<0.000000e+00> : vector<36x288xf32>
    %23 = tpu.matmul %18, %22, %cst_22 {dimension_numbers = #tpu.dot_dimension_numbers<[1], [0], [0], [1], [0, 0, 1, 1], [], []>} : vector<36x152xf32>, vector<152x288xf32>, vector<36x288xf32> -> vector<36x288xf32>
    %c0_23 = arith.constant 0 : index
    %c0_24 = arith.constant 0 : index
    %24 = vector.load %arg8[%c0_23, %c0_24] : memref<152x288xf32, #tpu.memory_space<vmem>>, vector<152x288xf32>
    %cst_25 = arith.constant dense<0.000000e+00> : vector<36x288xf32>
    %25 = tpu.matmul %21, %24, %cst_25 {dimension_numbers = #tpu.dot_dimension_numbers<[1], [0], [0], [1], [0, 0, 1, 1], [], []>} : vector<36x152xf32>, vector<152x288xf32>, vector<36x288xf32> -> vector<36x288xf32>
    %26 = arith.addf %23, %25 : vector<36x288xf32>
    %c0_26 = arith.constant 0 : index
    %c0_27 = arith.constant 0 : index
    %27 = vector.load %arg9[%c0_26, %c0_27] : memref<36x288xf32, #tpu.memory_space<vmem>>, vector<36x288xf32>
    tpu.vector_store %arg9[%c0_26, %c0_27], %26 {strides = array<i32>} : memref<36x288xf32, #tpu.memory_space<vmem>>, vector<36x288xf32>,
    return
  }
  func.func @transform_0(%arg0: i32) -> (i32, i32) {
    %c0_i32 = arith.constant 0 : i32
    %c0_i32_0 = arith.constant 0 : i32
    %c0_i32_1 = arith.constant 0 : i32
    return %c0_i32, %c0_i32_0 : i32, i32
  }
  func.func @transform_1(%arg0: i32) -> (i32, i32) {
    %c0_i32 = arith.constant 0 : i32
    %c0_i32_0 = arith.constant 0 : i32
    %c0_i32_1 = arith.constant 0 : i32
    return %c0_i32, %c0_i32_0 : i32, i32
  }
  func.func @transform_2(%arg0: i32) -> (i32, i32) {
    %c0_i32 = arith.constant 0 : i32
    %c0_i32_0 = arith.constant 0 : i32
    %c0_i32_1 = arith.constant 0 : i32
    return %c0_i32, %c0_i32_0 : i32, i32
  }
  func.func @transform_3(%arg0: i32) -> (i32, i32) {
    %c0_i32 = arith.constant 0 : i32
    %c0_i32_0 = arith.constant 0 : i32
    %c0_i32_1 = arith.constant 0 : i32
    return %c0_i32, %c0_i32_0 : i32, i32
  }
  func.func @transform_4(%arg0: i32) -> (i32, i32) {
    %c0_i32 = arith.constant 0 : i32
    %c0_i32_0 = arith.constant 0 : i32
    %c0_i32_1 = arith.constant 0 : i32
    return %c0_i32, %c0_i32_0 : i32, i32
  }
  func.func @transform_5(%arg0: i32) -> (i32, i32) {
    %c0_i32 = arith.constant 0 : i32
    %c0_i32_0 = arith.constant 0 : i32
    %c0_i32_1 = arith.constant 0 : i32
    return %c0_i32, %c0_i32_0 : i32, i32
  }
  func.func @transform_6(%arg0: i32) -> (i32, i32) {
    %c0_i32 = arith.constant 0 : i32
    %c0_i32_0 = arith.constant 0 : i32
    %c0_i32_1 = arith.constant 0 : i32
    return %c0_i32, %c0_i32_0 : i32, i32
  }
  func.func @transform_7(%arg0: i32) -> (i32, i32) {
    %c0_i32 = arith.constant 0 : i32
    %c0_i32_0 = arith.constant 0 : i32
    %c0_i32_1 = arith.constant 0 : i32
    return %c0_i32, %c0_i32_0 : i32, i32
  }
  func.func @transform_8(%arg0: i32) -> (i32, i32) {
    %c0_i32 = arith.constant 0 : i32
    %c0_i32_0 = arith.constant 0 : i32
    %c0_i32_1 = arith.constant 0 : i32
    return %c0_i32, %c0_i32_0 : i32, i32
  }
}

</mosaic_0001>

<llo_original>
// kernel: tile.7
$region0: #{tile.7}
  %s0 = inlined_call_operand.vmem [shape: f32[36,2,76], index: 0, kind: input, shape index: {}]
  %s1 = inlined_call_operand.vmem [shape: f32[36,152], index: 1, kind: output, shape index: {}]
  $region1: #{tile.7} parent=0
    #allocation0 [shape = 'u8[147456]{0}', space=vmem, size = 0x24000, scoped, tag = 'scoped mem for input reshape']
    %s3 = sshllo.u32 0, 2
    %s4 = smul.addr 2, 35
    %s5 = scalar_lea.vmem %s0, %s4
    %v6 = vld [vmem:[%s5] sm:%s3]
    %s7 = scalar_lea.vmem [#allocation0], 280
    %8 = vst [vmem:[%s7] sm:%s3] %v6
    %s9 = smul.addr 2, 34
    %s10 = scalar_lea.vmem %s0, %s9
    %v11 = vld [vmem:[%s10] sm:%s3]
    %s12 = scalar_lea.vmem [#allocation0], 272
    %13 = vst [vmem:[%s12] sm:%s3] %v11
    %s14 = smul.addr 2, 33
    %s15 = scalar_lea.vmem %s0, %s14
    %v16 = vld [vmem:[%s15] sm:%s3]
    %s17 = scalar_lea.vmem [#allocation0], 264
    %18 = vst [vmem:[%s17] sm:%s3] %v16
    %s19 = smul.addr 2, 32
    %s20 = scalar_lea.vmem %s0, %s19
    %v21 = vld [vmem:[%s20] sm:%s3]
    %s22 = scalar_lea.vmem [#allocation0], 256
    %23 = vst [vmem:[%s22] sm:%s3] %v21
    %s24 = smul.addr 2, 31
    %s25 = scalar_lea.vmem %s0, %s24
    %v26 = vld [vmem:[%s25] sm:%s3]
    %s27 = scalar_lea.vmem [#allocation0], 248
    %28 = vst [vmem:[%s27] sm:%s3] %v26
    %s29 = smul.addr 2, 30
    %s30 = scalar_lea.vmem %s0, %s29
    %v31 = vld [vmem:[%s30] sm:%s3]
    %s32 = scalar_lea.vmem [#allocation0], 240
    %33 = vst [vmem:[%s32] sm:%s3] %v31
    %s34 = smul.addr 2, 29
    %s35 = scalar_lea.vmem %s0, %s34
    %v36 = vld [vmem:[%s35] sm:%s3]
    %s37 = scalar_lea.vmem [#allocation0], 232
    %38 = vst [vmem:[%s37] sm:%s3] %v36
    %s39 = smul.addr 2, 28
    %s40 = scalar_lea.vmem %s0, %s39
    %v41 = vld [vmem:[%s40] sm:%s3]
    %s42 = scalar_lea.vmem [#allocation0], 224
    %43 = vst [vmem:[%s42] sm:%s3] %v41
    %s44 = smul.addr 2, 27
    %s45 = scalar_lea.vmem %s0, %s44
    %v46 = vld [vmem:[%s45] sm:%s3]
    %s47 = scalar_lea.vmem [#allocation0], 216
    %48 = vst [vmem:[%s47] sm:%s3] %v46
    %s49 = smul.addr 2, 26
    %s50 = scalar_lea.vmem %s0, %s49
    %v51 = vld [vmem:[%s50] sm:%s3]
    %s52 = scalar_lea.vmem [#allocation0], 208
    %53 = vst [vmem:[%s52] sm:%s3] %v51
    %s54 = smul.addr 2, 25
    %s55 = scalar_lea.vmem %s0, %s54
    %v56 = vld [vmem:[%s55] sm:%s3]
    %s57 = scalar_lea.vmem [#allocation0], 200
    %58 = vst [vmem:[%s57] sm:%s3] %v56
    %s59 = smul.addr 2, 24
    %s60 = scalar_lea.vmem %s0, %s59
    %v61 = vld [vmem:[%s60] sm:%s3]
    %s62 = scalar_lea.vmem [#allocation0], 192
    %63 = vst [vmem:[%s62] sm:%s3] %v61
    %s64 = smul.addr 2, 23
    %s65 = scalar_lea.vmem %s0, %s64
    %v66 = vld [vmem:[%s65] sm:%s3]
    %s67 = scalar_lea.vmem [#allocation0], 184
    %68 = vst [vmem:[%s67] sm:%s3] %v66
    %s69 = smul.addr 2, 22
    %s70 = scalar_lea.vmem %s0, %s69
    %v71 = vld [vmem:[%s70] sm:%s3]
    %s72 = scalar_lea.vmem [#allocation0], 176
    %73 = vst [vmem:[%s72] sm:%s3] %v71
    %s74 = smul.addr 2, 21
    %s75 = scalar_lea.vmem %s0, %s74
    %v76 = vld [vmem:[%s75] sm:%s3]
    %s77 = scalar_lea.vmem [#allocation0], 168
    %78 = vst [vmem:[%s77] sm:%s3] %v76
    %s79 = smul.addr 2, 20
    %s80 = scalar_lea.vmem %s0, %s79
    %v81 = vld [vmem:[%s80] sm:%s3]
    %s82 = scalar_lea.vmem [#allocation0], 160
    %83 = vst [vmem:[%s82] sm:%s3] %v81
    %s84 = smul.addr 2, 19
    %s85 = scalar_lea.vmem %s0, %s84
    %v86 = vld [vmem:[%s85] sm:%s3]
    %s87 = scalar_lea.vmem [#allocation0], 152
    %88 = vst [vmem:[%s87] sm:%s3] %v86
    %s89 = smul.addr 2, 18
    %s90 = scalar_lea.vmem %s0, %s89
    %v91 = vld [vmem:[%s90] sm:%s3]
    %s92 = scalar_lea.vmem [#allocation0], 144
    %93 = vst [vmem:[%s92] sm:%s3] %v91
    %s94 = smul.addr 2, 17
    %s95 = scalar_lea.vmem %s0, %s94
    %v96 = vld [vmem:[%s95] sm:%s3]
    %s97 = scalar_lea.vmem [#allocation0], 136
    %98 = vst [vmem:[%s97] sm:%s3] %v96
    %s99 = smul.addr 2, 16
    %s100 = scalar_lea.vmem %s0, %s99
    %v101 = vld [vmem:[%s100] sm:%s3]
    %s102 = scalar_lea.vmem [#allocation0], 128
    %103 = vst [vmem:[%s102] sm:%s3] %v101
    %s104 = smul.addr 2, 15
    %s105 = scalar_lea.vmem %s0, %s104
    %v106 = vld [vmem:[%s105] sm:%s3]
    %s107 = scalar_lea.vmem [#allocation0], 120
    %108 = vst [vmem:[%s107] sm:%s3] %v106
    %s109 = smul.addr 2, 14
    %s110 = scalar_lea.vmem %s0, %s109
    %v111 = vld [vmem:[%s110] sm:%s3]
    %s112 = scalar_lea.vmem [#allocation0], 112
    %113 = vst [vmem:[%s112] sm:%s3] %v111
    %s114 = smul.addr 2, 13
    %s115 = scalar_lea.vmem %s0, %s114
    %v116 = vld [vmem:[%s115] sm:%s3]
    %s117 = scalar_lea.vmem [#allocation0], 104
    %118 = vst [vmem:[%s117] sm:%s3] %v116
    %s119 = smul.addr 2, 12
    %s120 = scalar_lea.vmem %s0, %s119
    %v121 = vld [vmem:[%s120] sm:%s3]
    %s122 = scalar_lea.vmem [#allocation0], 96
    %123 = vst [vmem:[%s122] sm:%s3] %v121
    %s124 = smul.addr 2, 11
    %s125 = scalar_lea.vmem %s0, %s124
    %v126 = vld [vmem:[%s125] sm:%s3]
    %s127 = scalar_lea.vmem [#allocation0], 88
    %128 = vst [vmem:[%s127] sm:%s3] %v126
    %s129 = smul.addr 2, 10
    %s130 = scalar_lea.vmem %s0, %s129
    %v131 = vld [vmem:[%s130] sm:%s3]
    %s132 = scalar_lea.vmem [#allocation0], 80
    %133 = vst [vmem:[%s132] sm:%s3] %v131
    %s134 = smul.addr 2, 9
    %s135 = scalar_lea.vmem %s0, %s134
    %v136 = vld [vmem:[%s135] sm:%s3]
    %s137 = scalar_lea.vmem [#allocation0], 72
    %138 = vst [vmem:[%s137] sm:%s3] %v136
    %s139 = smul.addr 2, 8
    %s140 = scalar_lea.vmem %s0, %s139
    %v141 = vld [vmem:[%s140] sm:%s3]
    %s142 = scalar_lea.vmem [#allocation0], 64
    %143 = vst [vmem:[%s142] sm:%s3] %v141
    %s144 = smul.addr 2, 7
    %s145 = scalar_lea.vmem %s0, %s144
    %v146 = vld [vmem:[%s145] sm:%s3]
    %s147 = scalar_lea.vmem [#allocation0], 56
    %148 = vst [vmem:[%s147] sm:%s3] %v146
    %s149 = smul.addr 2, 6
    %s150 = scalar_lea.vmem %s0, %s149
    %v151 = vld [vmem:[%s150] sm:%s3]
    %s152 = scalar_lea.vmem [#allocation0], 48
    %153 = vst [vmem:[%s152] sm:%s3] %v151
    %s154 = smul.addr 2, 5
    %s155 = scalar_lea.vmem %s0, %s154
    %v156 = vld [vmem:[%s155] sm:%s3]
    %s157 = scalar_lea.vmem [#allocation0], 40
    %158 = vst [vmem:[%s157] sm:%s3] %v156
    %s159 = smul.addr 2, 4
    %s160 = scalar_lea.vmem %s0, %s159
    %v161 = vld [vmem:[%s160] sm:%s3]
    %s162 = scalar_lea.vmem [#allocation0], 32
    %163 = vst [vmem:[%s162] sm:%s3] %v161
    %s164 = smul.addr 2, 3
    %s165 = scalar_lea.vmem %s0, %s164
    %v166 = vld [vmem:[%s165] sm:%s3]
    %s167 = scalar_lea.vmem [#allocation0], 24
    %168 = vst [vmem:[%s167] sm:%s3] %v166
    %s169 = smul.addr 2, 2
    %s170 = scalar_lea.vmem %s0, %s169
    %v171 = vld [vmem:[%s170] sm:%s3]
    %s172 = scalar_lea.vmem [#allocation0], 16
    %173 = vst [vmem:[%s172] sm:%s3] %v171
    %s174 = scalar_lea.vmem %s0, 2
    %v175 = vld [vmem:[%s174] sm:%s3]
    %s176 = scalar_lea.vmem [#allocation0], 8
    %177 = vst [vmem:[%s176] sm:%s3] %v175
    %v178 = vld [vmem:[%s0] sm:%s3]
    %179 = vst [vmem:[#allocation0] sm:%s3] %v178
    %v180 = vld [vmem:[#allocation0] ss:$8 sm:$0xf]
    %v181 = vld [vmem:[#allocation0] ss:$8 sm:$0xf0]
    %vm182 = vcmask 1047556
    %v183 = vsel %vm182, %v181, %v180
    %vm184 = vcmask 621568
    %185 = vst.msk [vmem:[%s1] sm:$0xff] %vm184, %v183
    %s186 = scalar_lea.vmem [#allocation0], 64
    %v187 = vld [vmem:[%s186] ss:$8 sm:$0xf]
    %s188 = scalar_lea.vmem [#allocation0], 64
    %v189 = vld [vmem:[%s188] ss:$8 sm:$0xf0]
    %vm190 = vcmask 1047556
    %v191 = vsel %vm190, %v189, %v187
    %vm192 = vcmask 621568
    %s193 = scalar_lea.vmem %s1, 16
    %194 = vst.msk [vmem:[%s193] sm:$0xff] %vm192, %v191
    %s195 = scalar_lea.vmem [#allocation0], 128
    %v196 = vld [vmem:[%s195] ss:$8 sm:$0xf]
    %s197 = scalar_lea.vmem [#allocation0], 128
    %v198 = vld [vmem:[%s197] ss:$8 sm:$0xf0]
    %vm199 = vcmask 1047556
    %v200 = vsel %vm199, %v198, %v196
    %vm201 = vcmask 621568
    %s202 = scalar_lea.vmem %s1, 32
    %203 = vst.msk [vmem:[%s202] sm:$0xff] %vm201, %v200
    %s204 = scalar_lea.vmem [#allocation0], 192
    %v205 = vld [vmem:[%s204] ss:$8 sm:$0xf]
    %s206 = scalar_lea.vmem [#allocation0], 192
    %v207 = vld [vmem:[%s206] ss:$8 sm:$0xf0]
    %vm208 = vcmask 1047556
    %v209 = vsel %vm208, %v207, %v205
    %vm210 = vcmask 621568
    %s211 = scalar_lea.vmem %s1, 48
    %212 = vst.msk [vmem:[%s211] sm:$0xff] %vm210, %v209
    %s213 = scalar_lea.vmem [#allocation0], 256
    %v214 = vld [vmem:[%s213] ss:$8 sm:$0xf]
    %vm215 = vcmask 621568
    %s216 = scalar_lea.vmem %s1, 64
    %217 = vst.msk [vmem:[%s216] sm:$0xf] %vm215, %v214
    %s218 = scalar_lea.vmem [#allocation0], 1
    %v219 = vld [vmem:[%s218] ss:$8 sm:$0xf]
    %s220 = scalar_lea.vmem [#allocation0], 1
    %v221 = vld [vmem:[%s220] ss:$8 sm:$0xf0]
    %vm222 = vcmask 1047556
    %v223 = vsel %vm222, %v221, %v219
    %s224 = scalar_lea.vmem [#allocation0], 1
    %v225 = vld [vmem:[%s224] ss:$8 sm:$0xf]
    %s226 = scalar_lea.vmem [#allocation0], 1
    %v227 = vld [vmem:[%s226] ss:$8 sm:$0xf0]
    %vm228 = vcmask 1047556
    %v229 = vsel %vm228, %v227, %v225
    %vm230 = vcmask 424960
    %v231 = vsel %vm230, %v229, %v223
    %232 = vrot.lane.b32.xlu0 %v231, 76
    %v233 = vpop.permute.xlu0 %232
    %vm234 = vcmask 195584
    %s235 = scalar_lea.vmem %s1, 8
    %236 = vst.msk [vmem:[%s235] sm:$0xff] %vm234, %v233
    %vm237 = vcmask 1048160
    %238 = vst.msk [vmem:[%s1] sm:$0xff] %vm237, %v233
    %s239 = scalar_lea.vmem [#allocation0], 129
    %v240 = vld [vmem:[%s239] ss:$8 sm:$0xf]
    %s241 = scalar_lea.vmem [#allocation0], 129
    %v242 = vld [vmem:[%s241] ss:$8 sm:$0xf0]
    %vm243 = vcmask 1047556
    %v244 = vsel %vm243, %v242, %v240
    %s245 = scalar_lea.vmem [#allocation0], 129
    %v246 = vld [vmem:[%s245] ss:$8 sm:$0xf]
    %s247 = scalar_lea.vmem [#allocation0], 129
    %v248 = vld [vmem:[%s247] ss:$8 sm:$0xf0]
    %vm249 = vcmask 1047556
    %v250 = vsel %vm249, %v248, %v246
    %vm251 = vcmask 424960
    %v252 = vsel %vm251, %v250, %v244
    %253 = vrot.lane.b32.xlu0 %v252, 76
    %v254 = vpop.permute.xlu0 %253
    %vm255 = vcmask 195584
    %s256 = scalar_lea.vmem %s1, 40
    %257 = vst.msk [vmem:[%s256] sm:$0xff] %vm255, %v254
    %vm258 = vcmask 1048160
    %s259 = scalar_lea.vmem %s1, 32
    %260 = vst.msk [vmem:[%s259] sm:$0xff] %vm258, %v254
    %s261 = scalar_lea.vmem [#allocation0], 257
    %v262 = vld [vmem:[%s261] ss:$8 sm:$0xf]
    %s263 = scalar_lea.vmem [#allocation0], 33
    %v264 = vld [vmem:[%s263] ss:$8 sm:$0xf0]
    %vm265 = vcmask 1047556
    %v266 = vsel %vm265, %v264, %v262
    %s267 = scalar_lea.vmem [#allocation0], 257
    %v268 = vld [vmem:[%s267] ss:$8 sm:$0xf]
    %s269 = scalar_lea.vmem [#allocation0], 33
    %v270 = vld [vmem:[%s269] ss:$8 sm:$0xf0]
    %vm271 = vcmask 1047556
    %v272 = vsel %vm271, %v270, %v268
    %vm273 = vcmask 424960
    %v274 = vsel %vm273, %v272, %v266
    %275 = vrot.lane.b32.xlu0 %v274, 76
    %v276 = vpop.permute.xlu0 %275
    %vm277 = vcmask 195584
    %s278 = scalar_lea.vmem %s1, 72
    %279 = vst.msk [vmem:[%s278] sm:$0xf] %vm277, %v276
    %s280 = scalar_lea.vmem %s1, 20
    %281 = vst.msk [vmem:[%s280] sm:$0xf0] %vm277, %v276
    %vm282 = vcmask 1048160
    %s283 = scalar_lea.vmem %s1, 64
    %284 = vst.msk [vmem:[%s283] sm:$0xf] %vm282, %v276
    %s285 = scalar_lea.vmem %s1, 12
    %286 = vst.msk [vmem:[%s285] sm:$0xf0] %vm282, %v276
    %s287 = scalar_lea.vmem [#allocation0], 193
    %v288 = vld [vmem:[%s287] ss:$8 sm:$0xf]
    %s289 = scalar_lea.vmem [#allocation0], 65
    %v290 = vld [vmem:[%s289] ss:$8 sm:$0xf0]
    %vm291 = vcmask 1047556
    %v292 = vsel %vm291, %v290, %v288
    %s293 = scalar_lea.vmem [#allocation0], 193
    %v294 = vld [vmem:[%s293] ss:$8 sm:$0xf]
    %s295 = scalar_lea.vmem [#allocation0], 65
    %v296 = vld [vmem:[%s295] ss:$8 sm:$0xf0]
    %vm297 = vcmask 1047556
    %v298 = vsel %vm297, %v296, %v294
    %vm299 = vcmask 424960
    %v300 = vsel %vm299, %v298, %v292
    %301 = vrot.lane.b32.xlu0 %v300, 76
    %v302 = vpop.permute.xlu0 %301
    %vm303 = vcmask 195584
    %s304 = scalar_lea.vmem %s1, 56
    %305 = vst.msk [vmem:[%s304] sm:$0xf] %vm303, %v302
    %s306 = scalar_lea.vmem %s1, 24
    %307 = vst.msk [vmem:[%s306] sm:$0xf0] %vm303, %v302
    %vm308 = vcmask 1048160
    %s309 = scalar_lea.vmem %s1, 48
    %310 = vst.msk [vmem:[%s309] sm:$0xf] %vm308, %v302
    %s311 = scalar_lea.vmem %s1, 16
    %312 = vst.msk [vmem:[%s311] sm:$0xf0] %vm308, %v302
    %s313 = scalar_lea.vmem [#allocation0], 225
    %v314 = vld [vmem:[%s313] ss:$8 sm:$0xf]
    %s315 = scalar_lea.vmem [#allocation0], 225
    %v316 = vld [vmem:[%s315] ss:$8 sm:$0xf]
    %vm317 = vcmask 424960
    %v318 = vsel %vm317, %v316, %v314
    %319 = vrot.lane.b32.xlu0 %v318, 76
    %v320 = vpop.permute.xlu0 %319
    %vm321 = vcmask 195584
    %s322 = scalar_lea.vmem %s1, 60
    %323 = vst.msk [vmem:[%s322] sm:$0xf] %vm321, %v320
    %vm324 = vcmask 1048160
    %s325 = scalar_lea.vmem %s1, 52
    %326 = vst.msk [vmem:[%s325] sm:$0xf] %vm324, %v320

// kernel: fff_forward.1
$region0: #{fff_forward.1}
  #allocation0 [shape = 'u32[]', space=smem, size = 0x4, offset = 0x4, fixed_abs, tag = 'smem constant byte address 0x4 - core index']
  #allocation1 [shape = 'u32[144,128]{1,0:T(1,128)}', space=vmem, size = 0x12000, scoped, tag = 'internal scratch']
  %s0 = inlined_call_operand.vmem [shape: f32[36,288], index: 0, kind: input, shape index: {}]
  %s1 = inlined_call_operand.vmem [shape: f32[36,152], index: 1, kind: input, shape index: {}]
  %s2 = inlined_call_operand.hbm [shape: f32[36,36], index: 2, kind: input, shape index: {}]
  %s3 = inlined_call_operand.vmem [shape: f32[36,36], index: 3, kind: input, shape index: {}]
  %s4 = inlined_call_operand.vmem [shape: f32[288,152], index: 4, kind: input, shape index: {}]
  %s5 = inlined_call_operand.vmem [shape: f32[288,152], index: 5, kind: input, shape index: {}]
  %s6 = inlined_call_operand.hbm [shape: f32[152,288], index: 6, kind: input, shape index: {}]
  %s7 = inlined_call_operand.vmem [shape: f32[152,288], index: 7, kind: input, shape index: {}]
  %s8 = inlined_call_operand.vmem [shape: f32[36,288], index: 8, kind: output, shape index: {}]
  %s9 = sld [smem:[#allocation0]]
  $region50: #{fff_forward.1} parent=0
    _
  %s11 = ssub.s32 1, %s9
  %s12 = scalar_select 0, %s11, %s9
  $region1: #{fff_forward.1} parent=0
    #allocation2 [shape = 'u8[20480]{0}', space=vmem, size = 0x5000, scoped, tag = 'input window, operand 2, single buffered']
    #allocation3 [shape = 's32[1]{0}', space=sflag, size = 0x4, scoped, tag = 'scoped memory for fff_forward.1']
    #allocation4 [shape = 'u8[233472]{0}', space=vmem, size = 0x39000, scoped, tag = 'input window, operand 6, single buffered']
    #allocation5 [shape = 's32[1]{0}', space=sflag, size = 0x4, scoped, tag = 'scoped memory for fff_forward.1']
    %13 = vsyncpa [#allocation3], 0
    %14 = vsyncpa [#allocation5], 0
    // Predicated region
    $region2: #{fff_forward.1} parent=1 // pred_check
      _
    $region3: #{fff_forward.1} parent=1 // pred_check_branch
      %16 = sbr.rel (0) target = $region5
    $region4: #{fff_forward.1} parent=1 // pred_region
      _
    $region5: #{fff_forward.1} parent=1 // pred_fallthru
      _
    // Predicated region
    $region6: #{fff_forward.1} parent=1 // pred_check
      _
    $region7: #{fff_forward.1} parent=1 // pred_check_branch
      %18 = sbr.rel (0) target = $region9
    $region8: #{fff_forward.1} parent=1 // pred_region
      _
    $region9: #{fff_forward.1} parent=1 // pred_fallthru
      _
    // Predicated region
    $region10: #{fff_forward.1} parent=1 // pred_check
      _
    $region11: #{fff_forward.1} parent=1 // pred_check_branch
      %20 = sbr.rel (0) target = $region13
    $region12: #{fff_forward.1} parent=1 // pred_region
      %s22 = ssub.s32 640, 640
      %23 = vsyncadd [#allocation3], %s22
      %s24 = sshll.u32 [#allocation2], 4
      %s25 = int_to_ptr.vmem [resolvable:$true] %s24
      %30 = dma.hbm_to_vmem [thread:$0]  %s2, 640, %s25, [#allocation3], 128, 128, 8
    $region13: #{fff_forward.1} parent=1 // pred_fallthru
      _
    // Predicated region
    $region14: #{fff_forward.1} parent=1 // pred_check
      _
    $region15: #{fff_forward.1} parent=1 // pred_check_branch
      %32 = sbr.rel (0) target = $region17
    $region16: #{fff_forward.1} parent=1 // pred_region
      _
    $region17: #{fff_forward.1} parent=1 // pred_fallthru
      _
    // Predicated region
    $region18: #{fff_forward.1} parent=1 // pred_check
      _
    $region19: #{fff_forward.1} parent=1 // pred_check_branch
      %34 = sbr.rel (0) target = $region21
    $region20: #{fff_forward.1} parent=1 // pred_region
      _
    $region21: #{fff_forward.1} parent=1 // pred_fallthru
      _
    // Predicated region
    $region22: #{fff_forward.1} parent=1 // pred_check
      _
    $region23: #{fff_forward.1} parent=1 // pred_check_branch
      %36 = sbr.rel (0) target = $region25
    $region24: #{fff_forward.1} parent=1 // pred_region
      _
    $region25: #{fff_forward.1} parent=1 // pred_fallthru
      _
    // Predicated region
    $region26: #{fff_forward.1} parent=1 // pred_check
      _
    $region27: #{fff_forward.1} parent=1 // pred_check_branch
      %38 = sbr.rel (0) target = $region29
    $region28: #{fff_forward.1} parent=1 // pred_region
      %s40 = ssub.s32 7296, 7296
      %41 = vsyncadd [#allocation5], %s40
      %s42 = sshll.u32 [#allocation4], 4
      %s43 = int_to_ptr.vmem [resolvable:$true] %s42
      %48 = dma.hbm_to_vmem [thread:$0]  %s6, 7296, %s43, [#allocation5], 384, 384, 24
    $region29: #{fff_forward.1} parent=1 // pred_fallthru
      _
    // Predicated region
    $region30: #{fff_forward.1} parent=1 // pred_check
      _
    $region31: #{fff_forward.1} parent=1 // pred_check_branch
      %50 = sbr.rel (0) target = $region33
    $region32: #{fff_forward.1} parent=1 // pred_region
      _
    $region33: #{fff_forward.1} parent=1 // pred_fallthru
      _
    // Predicated region
    $region34: #{fff_forward.1} parent=1 // pred_check
      _
    $region35: #{fff_forward.1} parent=1 // pred_check_branch
      %52 = sbr.rel (0) target = $region37
    $region36: #{fff_forward.1} parent=1 // pred_region
      %53 = dma.done [#allocation3], 640
    $region37: #{fff_forward.1} parent=1 // pred_fallthru
      _
    // Predicated region
    $region38: #{fff_forward.1} parent=1 // pred_check
      _
    $region39: #{fff_forward.1} parent=1 // pred_check_branch
      %55 = sbr.rel (0) target = $region41
    $region40: #{fff_forward.1} parent=1 // pred_region
      %56 = dma.done [#allocation5], 7296
    $region41: #{fff_forward.1} parent=1 // pred_fallthru
      _
    %v57 = vld [vmem:[%s0] sm:$0xff]
    %v58 = vld [vmem:[%s0 + $0x8] sm:$0xff]
    %v59 = vld [vmem:[%s0 + $0x10] sm:$0xff]
    %v60 = vld [vmem:[%s0 + $0x18] sm:$0xff]
    %v61 = vld [vmem:[%s0 + $0x20] sm:$0xff]
    %v62 = vld [vmem:[%s0 + $0x28] sm:$0xff]
    %v63 = vld [vmem:[%s0 + $0x30] sm:$0xff]
    %v64 = vld [vmem:[%s0 + $0x38] sm:$0xff]
    %v65 = vld [vmem:[%s0 + $0x40] sm:$0xff]
    %v66 = vld [vmem:[%s0 + $0x48] sm:$0xff]
    %v67 = vld [vmem:[%s0 + $0x50] sm:$0xff]
    %v68 = vld [vmem:[%s0 + $0x58] sm:$0xff]
    %v69 = vld [vmem:[%s0 + $0x60] sm:$0xf]
    %v70 = vld [vmem:[%s0 + $0x68] sm:$0xf]
    %v71 = vld [vmem:[%s0 + $0x70] sm:$0xf]
    %v72 = vld [vmem:[#allocation2] sm:$0xff]
    %v73 = vld [vmem:[#allocation2 + $0x8] sm:$0xff]
    %v74 = vld [vmem:[#allocation2 + $0x10] sm:$0xff]
    %v75 = vld [vmem:[#allocation2 + $0x18] sm:$0xff]
    %v76 = vld [vmem:[#allocation2 + $0x20] sm:$0xf]
    %v77 = vld [vmem:[%s3] sm:$0xff]
    %v78 = vld [vmem:[%s3 + $0x8] sm:$0xff]
    %v79 = vld [vmem:[%s3 + $0x10] sm:$0xff]
    %v80 = vld [vmem:[%s3 + $0x18] sm:$0xff]
    %v81 = vld [vmem:[%s3 + $0x20] sm:$0xf]
    %vm82 = vcmask 293888
    %v84 = vsel %vm82, %v72, 0
    %v87 = vsel %vm82, %v73, 0
    %v90 = vsel %vm82, %v74, 0
    %v93 = vsel %vm82, %v75, 0
    %v96 = vsel %vm82, %v76, 0
    %vm98 = vcmask 1043456
    %v100 = vsel %vm98, %v69, 0
    %v103 = vsel %vm98, %v70, 0
    %v106 = vsel %vm98, %v71, 0
    %108 = vmatprep.subr.mxu0 %v58
    %109 = vmatpush1.msra.mxu0 %v57
    %110 = vmatprep.subr.mxu0 %v61
    %111 = vmatpush1.msra.mxu0 %v60
    %112 = vmatprep.subr.mxu0 %v64
    %113 = vmatpush1.msra.mxu0 %v63
    %114 = vmatprep.subr.mxu0 %v67
    %115 = vmatpush1.msra.mxu0 %v66
    %116 = vmatprep.subr.mxu0 %v103
    %117 = vmatpush1.msra.mxu0 %v100
    %118 = vmatprep.subr.mxu0 0.0
    %119 = vmatpush1.msra.mxu0 0.0
    %120 = vmatprep.subr.mxu0 0.0
    %121 = vmatpush1.msra.mxu0 0.0
    %122 = vmatprep.subr.mxu0 0.0
    %123 = vmatpush1.msra.mxu0 0.0
    %124 = vmatprep.subr.mxu0 0.0
    %125 = vmatpush1.msra.mxu0 0.0
    %126 = vmatprep.subr.mxu0 0.0
    %127 = vmatpush1.msra.mxu0 0.0
    %128 = vmatprep.subr.mxu0 0.0
    %129 = vmatpush1.msra.mxu0 0.0
    %130 = vmatprep.subr.mxu0 0.0
    %131 = vmatpush1.msra.mxu0 0.0
    %132 = vmatprep.subr.mxu0 0.0
    %133 = vmatpush1.msra.mxu0 0.0
    %134 = vmatprep.subr.mxu0 0.0
    %135 = vmatpush1.msra.mxu0 0.0
    %136 = vmatprep.subr.mxu0 0.0
    %137 = vmatpush1.msra.mxu0 0.0
    %138 = vmatprep.subr.mxu0 0.0
    %139 = vmatpush1.msra.mxu0 0.0
    %140 = vmatprep.subr.mxu0 0.0
    %141 = vmatpush1.msra.mxu0 0.0
    %142 = vmatprep.subr.mxu0 0.0
    %143 = vmatpush1.msra.mxu0 0.0
    %144 = vmatprep.subr.mxu0 0.0
    %145 = vmatpush1.msra.mxu0 0.0
    %146 = vmatprep.subr.mxu0 0.0
    %147 = vmatpush1.msra.mxu0 0.0
    %148 = vmatprep.subr.mxu0 0.0
    %149 = vmatpush1.msra.mxu0 0.0
    %150 = vmatprep.subr.mxu0 0.0
    %151 = vmatpush1.msra.mxu0 0.0
    %152 = vmatprep.subr.mxu0 0.0
    %153 = vmatpush1.msra.mxu0 0.0
    %154 = vmatprep.subr.mxu0 0.0
    %155 = vmatpush1.msra.mxu0 0.0
    %156 = vmatprep.subr.mxu0 0.0
    %157 = vmatpush1.msra.mxu0 0.0
    %158 = vmatprep.subr.mxu0 0.0
    %159 = vmatpush1.msra.mxu0 0.0
    %160 = vmatprep.subr.mxu0 0.0
    %161 = vmatpush1.msra.mxu0 0.0
    %162 = vmatprep.subr.mxu0 0.0
    %163 = vmatpush1.msra.mxu0 0.0
    %164 = vmatprep.subr.mxu0 0.0
    %165 = vmatpush1.msra.mxu0 0.0
    %166 = vmatprep.subr.mxu0 0.0
    %167 = vmatpush1.msra.mxu0 0.0
    %168 = vmatprep.subr.mxu0 0.0
    %169 = vmatpush1.msra.mxu0 0.0
    %170 = vmatprep.subr.mxu0 0.0
    %171 = vmatpush1.msra.mxu0 0.0
    %172 = vmatprep.mubr.f32.mxu0 0.0
    %173 = vmatmul.mubr.f32.gmra.mrb[0].mxu0 %v84
    %v174 = vpop.f32.mrb[0].mxu0
    %v175 = vadd.f32 0.0, %v174
    %v176 = vpop.f32.mrb[0].mxu0
    %v177 = vadd.f32 0.0, %v176
    %178 = vmatprep.mubr.f32.mxu0 0.0
    %179 = vmatmul.mubr.f32.gmra.mrb[0].mxu0 %v87
    %v180 = vpop.f32.mrb[0].mxu0
    %v181 = vadd.f32 0.0, %v180
    %v182 = vpop.f32.mrb[0].mxu0
    %v183 = vadd.f32 0.0, %v182
    %184 = vmatprep.mubr.f32.mxu0 0.0
    %185 = vmatmul.mubr.f32.gmra.mrb[0].mxu0 %v90
    %v186 = vpop.f32.mrb[0].mxu0
    %v187 = vadd.f32 0.0, %v186
    %v188 = vpop.f32.mrb[0].mxu0
    %v189 = vadd.f32 0.0, %v188
    %190 = vmatprep.mubr.f32.mxu0 0.0
    %191 = vmatmul.mubr.f32.gmra.mrb[0].mxu0 %v93
    %v192 = vpop.f32.mrb[0].mxu0
    %v193 = vadd.f32 0.0, %v192
    %v194 = vpop.f32.mrb[0].mxu0
    %v195 = vadd.f32 0.0, %v194
    %196 = vmatprep.mubr.f32.mxu0 0.0
    %197 = vmatmul.mubr.f32.gmra.mrb[0].mxu0 %v96
    %v198 = vpop.f32.mrb[0].mxu0
    %v199 = vadd.f32 0.0, %v198
    %v200 = vpop.f32.mrb[0].mxu0
    %v201 = vadd.f32 0.0, %v200
    %202 = vdwg.mxu0
    %203 = vmatprep.subr.mxu0 0.0
    %204 = vmatpush1.msra.mxu0 %v59
    %205 = vmatprep.subr.mxu0 0.0
    %206 = vmatpush1.msra.mxu0 %v62
    %207 = vmatprep.subr.mxu0 0.0
    %208 = vmatpush1.msra.mxu0 %v65
    %209 = vmatprep.subr.mxu0 0.0
    %210 = vmatpush1.msra.mxu0 %v68
    %211 = vmatprep.subr.mxu0 0.0
    %212 = vmatpush1.msra.mxu0 %v106
    %213 = vmatprep.subr.mxu0 0.0
    %214 = vmatpush1.msra.mxu0 0.0
    %215 = vmatprep.subr.mxu0 0.0
    %216 = vmatpush1.msra.mxu0 0.0
    %217 = vmatprep.subr.mxu0 0.0
    %218 = vmatpush1.msra.mxu0 0.0
    %219 = vmatprep.subr.mxu0 0.0
    %220 = vmatpush1.msra.mxu0 0.0
    %221 = vmatprep.subr.mxu0 0.0
    %222 = vmatpush1.msra.mxu0 0.0
    %223 = vmatprep.subr.mxu0 0.0
    %224 = vmatpush1.msra.mxu0 0.0
    %225 = vmatprep.subr.mxu0 0.0
    %226 = vmatpush1.msra.mxu0 0.0
    %227 = vmatprep.subr.mxu0 0.0
    %228 = vmatpush1.msra.mxu0 0.0
    %229 = vmatprep.subr.mxu0 0.0
    %230 = vmatpush1.msra.mxu0 0.0
    %231 = vmatprep.subr.mxu0 0.0
    %232 = vmatpush1.msra.mxu0 0.0
    %233 = vmatprep.subr.mxu0 0.0
    %234 = vmatpush1.msra.mxu0 0.0
    %235 = vmatprep.subr.mxu0 0.0
    %236 = vmatpush1.msra.mxu0 0.0
    %237 = vmatprep.subr.mxu0 0.0
    %238 = vmatpush1.msra.mxu0 0.0
    %239 = vmatprep.subr.mxu0 0.0
    %240 = vmatpush1.msra.mxu0 0.0
    %241 = vmatprep.subr.mxu0 0.0
    %242 = vmatpush1.msra.mxu0 0.0
    %243 = vmatprep.subr.mxu0 0.0
    %244 = vmatpush1.msra.mxu0 0.0
    %245 = vmatprep.subr.mxu0 0.0
    %246 = vmatpush1.msra.mxu0 0.0
    %247 = vmatprep.subr.mxu0 0.0
    %248 = vmatpush1.msra.mxu0 0.0
    %249 = vmatprep.subr.mxu0 0.0
    %250 = vmatpush1.msra.mxu0 0.0
    %251 = vmatprep.subr.mxu0 0.0
    %252 = vmatpush1.msra.mxu0 0.0
    %253 = vmatprep.subr.mxu0 0.0
    %254 = vmatpush1.msra.mxu0 0.0
    %255 = vmatprep.subr.mxu0 0.0
    %256 = vmatpush1.msra.mxu0 0.0
    %257 = vmatprep.subr.mxu0 0.0
    %258 = vmatpush1.msra.mxu0 0.0
    %259 = vmatprep.subr.mxu0 0.0
    %260 = vmatpush1.msra.mxu0 0.0
    %261 = vmatprep.subr.mxu0 0.0
    %262 = vmatpush1.msra.mxu0 0.0
    %263 = vmatprep.subr.mxu0 0.0
    %264 = vmatpush1.msra.mxu0 0.0
    %265 = vmatprep.subr.mxu0 0.0
    %266 = vmatpush1.msra.mxu0 0.0
    %267 = vmatprep.mubr.f32.mxu0 0.0
    %268 = vmatmul.mubr.f32.gmra.mrb[0].mxu0 %v84
    %v269 = vpop.f32.mrb[0].mxu0
    %v270 = vadd.f32 0.0, %v269
    %v271 = vpop.f32.mrb[0].mxu0
    %272 = vmatprep.mubr.f32.mxu0 0.0
    %273 = vmatmul.mubr.f32.gmra.mrb[0].mxu0 %v87
    %v274 = vpop.f32.mrb[0].mxu0
    %v275 = vadd.f32 0.0, %v274
    %v276 = vpop.f32.mrb[0].mxu0
    %277 = vmatprep.mubr.f32.mxu0 0.0
    %278 = vmatmul.mubr.f32.gmra.mrb[0].mxu0 %v90
    %v279 = vpop.f32.mrb[0].mxu0
    %v280 = vadd.f32 0.0, %v279
    %v281 = vpop.f32.mrb[0].mxu0
    %282 = vmatprep.mubr.f32.mxu0 0.0
    %283 = vmatmul.mubr.f32.gmra.mrb[0].mxu0 %v93
    %v284 = vpop.f32.mrb[0].mxu0
    %v285 = vadd.f32 0.0, %v284
    %v286 = vpop.f32.mrb[0].mxu0
    %287 = vmatprep.mubr.f32.mxu0 0.0
    %288 = vmatmul.mubr.f32.gmra.mrb[0].mxu0 %v96
    %v289 = vpop.f32.mrb[0].mxu0
    %v290 = vadd.f32 0.0, %v289
    %v291 = vpop.f32.mrb[0].mxu0
    %292 = vdwg.mxu0
    %v294 = vsel %vm82, %v77, 0
    %v297 = vsel %vm82, %v78, 0
    %v300 = vsel %vm82, %v79, 0
    %v303 = vsel %vm82, %v80, 0
    %v306 = vsel %vm82, %v81, 0
    %308 = vmatprep.subr.mxu0 %v58
    %309 = vmatpush1.msra.mxu0 %v57
    %310 = vmatprep.subr.mxu0 %v61
    %311 = vmatpush1.msra.mxu0 %v60
    %312 = vmatprep.subr.mxu0 %v64
    %313 = vmatpush1.msra.mxu0 %v63
    %314 = vmatprep.subr.mxu0 %v67
    %315 = vmatpush1.msra.mxu0 %v66
    %316 = vmatprep.subr.mxu0 %v103
    %317 = vmatpush1.msra.mxu0 %v100
    %318 = vmatprep.subr.mxu0 0.0
    %319 = vmatpush1.msra.mxu0 0.0
    %320 = vmatprep.subr.mxu0 0.0
    %321 = vmatpush1.msra.mxu0 0.0
    %322 = vmatprep.subr.mxu0 0.0
    %323 = vmatpush1.msra.mxu0 0.0
    %324 = vmatprep.subr.mxu0 0.0
    %325 = vmatpush1.msra.mxu0 0.0
    %326 = vmatprep.subr.mxu0 0.0
    %327 = vmatpush1.msra.mxu0 0.0
    %328 = vmatprep.subr.mxu0 0.0
    %329 = vmatpush1.msra.mxu0 0.0
    %330 = vmatprep.subr.mxu0 0.0
    %331 = vmatpush1.msra.mxu0 0.0
    %332 = vmatprep.subr.mxu0 0.0
    %333 = vmatpush1.msra.mxu0 0.0
    %334 = vmatprep.subr.mxu0 0.0
    %335 = vmatpush1.msra.mxu0 0.0
    %336 = vmatprep.subr.mxu0 0.0
    %337 = vmatpush1.msra.mxu0 0.0
    %338 = vmatprep.subr.mxu0 0.0
    %339 = vmatpush1.msra.mxu0 0.0
    %340 = vmatprep.subr.mxu0 0.0
    %341 = vmatpush1.msra.mxu0 0.0
    %342 = vmatprep.subr.mxu0 0.0
    %343 = vmatpush1.msra.mxu0 0.0
    %344 = vmatprep.subr.mxu0 0.0
    %345 = vmatpush1.msra.mxu0 0.0
    %346 = vmatprep.subr.mxu0 0.0
    %347 = vmatpush1.msra.mxu0 0.0
    %348 = vmatprep.subr.mxu0 0.0
    %349 = vmatpush1.msra.mxu0 0.0
    %350 = vmatprep.subr.mxu0 0.0
    %351 = vmatpush1.msra.mxu0 0.0
    %352 = vmatprep.subr.mxu0 0.0
    %353 = vmatpush1.msra.mxu0 0.0
    %354 = vmatprep.subr.mxu0 0.0
    %355 = vmatpush1.msra.mxu0 0.0
    %356 = vmatprep.subr.mxu0 0.0
    %357 = vmatpush1.msra.mxu0 0.0
    %358 = vmatprep.subr.mxu0 0.0
    %359 = vmatpush1.msra.mxu0 0.0
    %360 = vmatprep.subr.mxu0 0.0
    %361 = vmatpush1.msra.mxu0 0.0
    %362 = vmatprep.subr.mxu0 0.0
    %363 = vmatpush1.msra.mxu0 0.0
    %364 = vmatprep.subr.mxu0 0.0
    %365 = vmatpush1.msra.mxu0 0.0
    %366 = vmatprep.subr.mxu0 0.0
    %367 = vmatpush1.msra.mxu0 0.0
    %368 = vmatprep.subr.mxu0 0.0
    %369 = vmatpush1.msra.mxu0 0.0
    %370 = vmatprep.subr.mxu0 0.0
    %371 = vmatpush1.msra.mxu0 0.0
    %372 = vmatprep.mubr.f32.mxu0 0.0
    %373 = vmatmul.mubr.f32.gmra.mrb[0].mxu0 %v294
    %v374 = vpop.f32.mrb[0].mxu0
    %v375 = vadd.f32 0.0, %v374
    %v376 = vpop.f32.mrb[0].mxu0
    %v377 = vadd.f32 0.0, %v376
    %378 = vmatprep.mubr.f32.mxu0 0.0
    %379 = vmatmul.mubr.f32.gmra.mrb[0].mxu0 %v297
    %v380 = vpop.f32.mrb[0].mxu0
    %v381 = vadd.f32 0.0, %v380
    %v382 = vpop.f32.mrb[0].mxu0
    %v383 = vadd.f32 0.0, %v382
    %384 = vmatprep.mubr.f32.mxu0 0.0
    %385 = vmatmul.mubr.f32.gmra.mrb[0].mxu0 %v300
    %v386 = vpop.f32.mrb[0].mxu0
    %v387 = vadd.f32 0.0, %v386
    %v388 = vpop.f32.mrb[0].mxu0
    %v389 = vadd.f32 0.0, %v388
    %390 = vmatprep.mubr.f32.mxu0 0.0
    %391 = vmatmul.mubr.f32.gmra.mrb[0].mxu0 %v303
    %v392 = vpop.f32.mrb[0].mxu0
    %v393 = vadd.f32 0.0, %v392
    %v394 = vpop.f32.mrb[0].mxu0
    %v395 = vadd.f32 0.0, %v394
    %396 = vmatprep.mubr.f32.mxu0 0.0
    %397 = vmatmul.mubr.f32.gmra.mrb[0].mxu0 %v306
    %v398 = vpop.f32.mrb[0].mxu0
    %v399 = vadd.f32 0.0, %v398
    %v400 = vpop.f32.mrb[0].mxu0
    %v401 = vadd.f32 0.0, %v400
    %402 = vdwg.mxu0
    %403 = vmatprep.subr.mxu0 0.0
    %404 = vmatpush1.msra.mxu0 %v59
    %405 = vmatprep.subr.mxu0 0.0
    %406 = vmatpush1.msra.mxu0 %v62
    %407 = vmatprep.subr.mxu0 0.0
    %408 = vmatpush1.msra.mxu0 %v65
    %409 = vmatprep.subr.mxu0 0.0
    %410 = vmatpush1.msra.mxu0 %v68
    %411 = vmatprep.subr.mxu0 0.0
    %412 = vmatpush1.msra.mxu0 %v106
    %413 = vmatprep.subr.mxu0 0.0
    %414 = vmatpush1.msra.mxu0 0.0
    %415 = vmatprep.subr.mxu0 0.0
    %416 = vmatpush1.msra.mxu0 0.0
    %417 = vmatprep.subr.mxu0 0.0
    %418 = vmatpush1.msra.mxu0 0.0
    %419 = vmatprep.subr.mxu0 0.0
    %420 = vmatpush1.msra.mxu0 0.0
    %421 = vmatprep.subr.mxu0 0.0
    %422 = vmatpush1.msra.mxu0 0.0
    %423 = vmatprep.subr.mxu0 0.0
    %424 = vmatpush1.msra.mxu0 0.0
    %425 = vmatprep.subr.mxu0 0.0
    %426 = vmatpush1.msra.mxu0 0.0
    %427 = vmatprep.subr.mxu0 0.0
    %428 = vmatpush1.msra.mxu0 0.0
    %429 = vmatprep.subr.mxu0 0.0
    %430 = vmatpush1.msra.mxu0 0.0
    %431 = vmatprep.subr.mxu0 0.0
    %432 = vmatpush1.msra.mxu0 0.0
    %433 = vmatprep.subr.mxu0 0.0
    %434 = vmatpush1.msra.mxu0 0.0
    %435 = vmatprep.subr.mxu0 0.0
    %436 = vmatpush1.msra.mxu0 0.0
    %437 = vmatprep.subr.mxu0 0.0
    %438 = vmatpush1.msra.mxu0 0.0
    %439 = vmatprep.subr.mxu0 0.0
    %440 = vmatpush1.msra.mxu0 0.0
    %441 = vmatprep.subr.mxu0 0.0
    %442 = vmatpush1.msra.mxu0 0.0
    %443 = vmatprep.subr.mxu0 0.0
    %444 = vmatpush1.msra.mxu0 0.0
    %445 = vmatprep.subr.mxu0 0.0
    %446 = vmatpush1.msra.mxu0 0.0
    %447 = vmatprep.subr.mxu0 0.0
    %448 = vmatpush1.msra.mxu0 0.0
    %449 = vmatprep.subr.mxu0 0.0
    %450 = vmatpush1.msra.mxu0 0.0
    %451 = vmatprep.subr.mxu0 0.0
    %452 = vmatpush1.msra.mxu0 0.0
    %453 = vmatprep.subr.mxu0 0.0
    %454 = vmatpush1.msra.mxu0 0.0
    %455 = vmatprep.subr.mxu0 0.0
    %456 = vmatpush1.msra.mxu0 0.0
    %457 = vmatprep.subr.mxu0 0.0
    %458 = vmatpush1.msra.mxu0 0.0
    %459 = vmatprep.subr.mxu0 0.0
    %460 = vmatpush1.msra.mxu0 0.0
    %461 = vmatprep.subr.mxu0 0.0
    %462 = vmatpush1.msra.mxu0 0.0
    %463 = vmatprep.subr.mxu0 0.0
    %464 = vmatpush1.msra.mxu0 0.0
    %465 = vmatprep.subr.mxu0 0.0
    %466 = vmatpush1.msra.mxu0 0.0
    %467 = vmatprep.mubr.f32.mxu0 0.0
    %468 = vmatmul.mubr.f32.gmra.mrb[0].mxu0 %v294
    %v469 = vpop.f32.mrb[0].mxu0
    %v470 = vadd.f32 0.0, %v469
    %v471 = vpop.f32.mrb[0].mxu0
    %472 = vmatprep.mubr.f32.mxu0 0.0
    %473 = vmatmul.mubr.f32.gmra.mrb[0].mxu0 %v297
    %v474 = vpop.f32.mrb[0].mxu0
    %v475 = vadd.f32 0.0, %v474
    %v476 = vpop.f32.mrb[0].mxu0
    %477 = vmatprep.mubr.f32.mxu0 0.0
    %478 = vmatmul.mubr.f32.gmra.mrb[0].mxu0 %v300
    %v479 = vpop.f32.mrb[0].mxu0
    %v480 = vadd.f32 0.0, %v479
    %v481 = vpop.f32.mrb[0].mxu0
    %482 = vmatprep.mubr.f32.mxu0 0.0
    %483 = vmatmul.mubr.f32.gmra.mrb[0].mxu0 %v303
    %v484 = vpop.f32.mrb[0].mxu0
    %v485 = vadd.f32 0.0, %v484
    %v486 = vpop.f32.mrb[0].mxu0
    %487 = vmatprep.mubr.f32.mxu0 0.0
    %488 = vmatmul.mubr.f32.gmra.mrb[0].mxu0 %v306
    %v489 = vpop.f32.mrb[0].mxu0
    %v490 = vadd.f32 0.0, %v489
    %v491 = vpop.f32.mrb[0].mxu0
    %492 = vdwg.mxu0
    %v493 = vld [vmem:[%s4] sm:$0xff]
    %v494 = vld [vmem:[%s4 + $0x8] sm:$0xff]
    %v495 = vld [vmem:[%s4 + $0x10] sm:$0xff]
    %v496 = vld [vmem:[%s4 + $0x18] sm:$0xff]
    %v497 = vld [vmem:[%s4 + $0x20] sm:$0xff]
    %v498 = vld [vmem:[%s4 + $0x28] sm:$0xff]
    %v499 = vld [vmem:[%s4 + $0x30] sm:$0xff]
    %v500 = vld [vmem:[%s4 + $0x38] sm:$0xff]
    %v501 = vld [vmem:[%s4 + $0x40] sm:$0xff]
    %v502 = vld [vmem:[%s4 + $0x48] sm:$0xff]
    %v503 = vld [vmem:[%s4 + $0x50] sm:$0xff]
    %v504 = vld [vmem:[%s4 + $0x58] sm:$0xff]
    %v505 = vld [vmem:[%s4 + $0x60] sm:$0xff]
    %v506 = vld [vmem:[%s4 + $0x68] sm:$0xff]
    %v507 = vld [vmem:[%s4 + $0x70] sm:$0xff]
    %v508 = vld [vmem:[%s4 + $0x78] sm:$0xff]
    %v509 = vld [vmem:[%s4 + $0x80] sm:$0xff]
    %v510 = vld [vmem:[%s4 + $0x88] sm:$0xff]
    %v511 = vld [vmem:[%s4 + $0x90] sm:$0xff]
    %v512 = vld [vmem:[%s4 + $0x98] sm:$0xff]
    %v513 = vld [vmem:[%s4 + $0xa0] sm:$0xff]
    %v514 = vld [vmem:[%s4 + $0xa8] sm:$0xff]
    %v515 = vld [vmem:[%s4 + $0xb0] sm:$0xff]
    %v516 = vld [vmem:[%s4 + $0xb8] sm:$0xff]
    %v517 = vld [vmem:[%s4 + $0xc0] sm:$0xff]
    %v518 = vld [vmem:[%s4 + $0xc8] sm:$0xff]
    %v519 = vld [vmem:[%s4 + $0xd0] sm:$0xff]
    %v520 = vld [vmem:[%s4 + $0xd8] sm:$0xff]
    %v521 = vld [vmem:[%s4 + $0xe0] sm:$0xff]
    %v522 = vld [vmem:[%s4 + $0xe8] sm:$0xff]
    %v523 = vld [vmem:[%s4 + $0xf0] sm:$0xff]
    %v524 = vld [vmem:[%s4 + $0xf8] sm:$0xff]
    %v525 = vld [vmem:[%s4 + $0x100] sm:$0xff]
    %v526 = vld [vmem:[%s4 + $0x108] sm:$0xff]
    %v527 = vld [vmem:[%s4 + $0x110] sm:$0xff]
    %v528 = vld [vmem:[%s4 + $0x118] sm:$0xff]
    %v529 = vld [vmem:[%s4 + $0x120] sm:$0xff]
    %v530 = vld [vmem:[%s4 + $0x128] sm:$0xff]
    %v531 = vld [vmem:[%s4 + $0x130] sm:$0xff]
    %v532 = vld [vmem:[%s4 + $0x138] sm:$0xff]
    %v533 = vld [vmem:[%s4 + $0x140] sm:$0xff]
    %v534 = vld [vmem:[%s4 + $0x148] sm:$0xff]
    %v535 = vld [vmem:[%s4 + $0x150] sm:$0xff]
    %v536 = vld [vmem:[%s4 + $0x158] sm:$0xff]
    %v537 = vld [vmem:[%s4 + $0x160] sm:$0xff]
    %v538 = vld [vmem:[%s4 + $0x168] sm:$0xff]
    %v539 = vld [vmem:[%s4 + $0x170] sm:$0xff]
    %v540 = vld [vmem:[%s4 + $0x178] sm:$0xff]
    %v541 = vld [vmem:[%s4 + $0x180] sm:$0xff]
    %v542 = vld [vmem:[%s4 + $0x188] sm:$0xff]
    %v543 = vld [vmem:[%s4 + $0x190] sm:$0xff]
    %v544 = vld [vmem:[%s4 + $0x198] sm:$0xff]
    %v545 = vld [vmem:[%s4 + $0x1a0] sm:$0xff]
    %v546 = vld [vmem:[%s4 + $0x1a8] sm:$0xff]
    %v547 = vld [vmem:[%s4 + $0x1b0] sm:$0xff]
    %v548 = vld [vmem:[%s4 + $0x1b8] sm:$0xff]
    %v549 = vld [vmem:[%s4 + $0x1c0] sm:$0xff]
    %v550 = vld [vmem:[%s4 + $0x1c8] sm:$0xff]
    %v551 = vld [vmem:[%s4 + $0x1d0] sm:$0xff]
    %v552 = vld [vmem:[%s4 + $0x1d8] sm:$0xff]
    %v553 = vld [vmem:[%s4 + $0x1e0] sm:$0xff]
    %v554 = vld [vmem:[%s4 + $0x1e8] sm:$0xff]
    %v555 = vld [vmem:[%s4 + $0x1f0] sm:$0xff]
    %v556 = vld [vmem:[%s4 + $0x1f8] sm:$0xff]
    %v557 = vld [vmem:[%s4 + $0x200] sm:$0xff]
    %v558 = vld [vmem:[%s4 + $0x208] sm:$0xff]
    %v559 = vld [vmem:[%s4 + $0x210] sm:$0xff]
    %v560 = vld [vmem:[%s4 + $0x218] sm:$0xff]
    %v561 = vld [vmem:[%s4 + $0x220] sm:$0xff]
    %v562 = vld [vmem:[%s4 + $0x228] sm:$0xff]
    %v563 = vld [vmem:[%s4 + $0x230] sm:$0xff]
    %v564 = vld [vmem:[%s4 + $0x238] sm:$0xff]
    %v565 = vld [vmem:[%s5] sm:$0xff]
    %v566 = vld [vmem:[%s5 + $0x8] sm:$0xff]
    %v567 = vld [vmem:[%s5 + $0x10] sm:$0xff]
    %v568 = vld [vmem:[%s5 + $0x18] sm:$0xff]
    %v569 = vld [vmem:[%s5 + $0x20] sm:$0xff]
    %v570 = vld [vmem:[%s5 + $0x28] sm:$0xff]
    %v571 = vld [vmem:[%s5 + $0x30] sm:$0xff]
    %v572 = vld [vmem:[%s5 + $0x38] sm:$0xff]
    %v573 = vld [vmem:[%s5 + $0x40] sm:$0xff]
    %v574 = vld [vmem:[%s5 + $0x48] sm:$0xff]
    %v575 = vld [vmem:[%s5 + $0x50] sm:$0xff]
    %v576 = vld [vmem:[%s5 + $0x58] sm:$0xff]
    %v577 = vld [vmem:[%s5 + $0x60] sm:$0xff]
    %v578 = vld [vmem:[%s5 + $0x68] sm:$0xff]
    %v579 = vld [vmem:[%s5 + $0x70] sm:$0xff]
    %v580 = vld [vmem:[%s5 + $0x78] sm:$0xff]
    %v581 = vld [vmem:[%s5 + $0x80] sm:$0xff]
    %v582 = vld [vmem:[%s5 + $0x88] sm:$0xff]
    %v583 = vld [vmem:[%s5 + $0x90] sm:$0xff]
    %v584 = vld [vmem:[%s5 + $0x98] sm:$0xff]
    %v585 = vld [vmem:[%s5 + $0xa0] sm:$0xff]
    %v586 = vld [vmem:[%s5 + $0xa8] sm:$0xff]
    %v587 = vld [vmem:[%s5 + $0xb0] sm:$0xff]
    %v588 = vld [vmem:[%s5 + $0xb8] sm:$0xff]
    %v589 = vld [vmem:[%s5 + $0xc0] sm:$0xff]
    %v590 = vld [vmem:[%s5 + $0xc8] sm:$0xff]
    %v591 = vld [vmem:[%s5 + $0xd0] sm:$0xff]
    %v592 = vld [vmem:[%s5 + $0xd8] sm:$0xff]
    %v593 = vld [vmem:[%s5 + $0xe0] sm:$0xff]
    %v594 = vld [vmem:[%s5 + $0xe8] sm:$0xff]
    %v595 = vld [vmem:[%s5 + $0xf0] sm:$0xff]
    %v596 = vld [vmem:[%s5 + $0xf8] sm:$0xff]
    %v597 = vld [vmem:[%s5 + $0x100] sm:$0xff]
    %v598 = vld [vmem:[%s5 + $0x108] sm:$0xff]
    %v599 = vld [vmem:[%s5 + $0x110] sm:$0xff]
    %v600 = vld [vmem:[%s5 + $0x118] sm:$0xff]
    %v601 = vld [vmem:[%s5 + $0x120] sm:$0xff]
    %v602 = vld [vmem:[%s5 + $0x128] sm:$0xff]
    %v603 = vld [vmem:[%s5 + $0x130] sm:$0xff]
    %v604 = vld [vmem:[%s5 + $0x138] sm:$0xff]
    %v605 = vld [vmem:[%s5 + $0x140] sm:$0xff]
    %v606 = vld [vmem:[%s5 + $0x148] sm:$0xff]
    %v607 = vld [vmem:[%s5 + $0x150] sm:$0xff]
    %v608 = vld [vmem:[%s5 + $0x158] sm:$0xff]
    %v609 = vld [vmem:[%s5 + $0x160] sm:$0xff]
    %v610 = vld [vmem:[%s5 + $0x168] sm:$0xff]
    %v611 = vld [vmem:[%s5 + $0x170] sm:$0xff]
    %v612 = vld [vmem:[%s5 + $0x178] sm:$0xff]
    %v613 = vld [vmem:[%s5 + $0x180] sm:$0xff]
    %v614 = vld [vmem:[%s5 + $0x188] sm:$0xff]
    %v615 = vld [vmem:[%s5 + $0x190] sm:$0xff]
    %v616 = vld [vmem:[%s5 + $0x198] sm:$0xff]
    %v617 = vld [vmem:[%s5 + $0x1a0] sm:$0xff]
    %v618 = vld [vmem:[%s5 + $0x1a8] sm:$0xff]
    %v619 = vld [vmem:[%s5 + $0x1b0] sm:$0xff]
    %v620 = vld [vmem:[%s5 + $0x1b8] sm:$0xff]
    %v621 = vld [vmem:[%s5 + $0x1c0] sm:$0xff]
    %v622 = vld [vmem:[%s5 + $0x1c8] sm:$0xff]
    %v623 = vld [vmem:[%s5 + $0x1d0] sm:$0xff]
    %v624 = vld [vmem:[%s5 + $0x1d8] sm:$0xff]
    %v625 = vld [vmem:[%s5 + $0x1e0] sm:$0xff]
    %v626 = vld [vmem:[%s5 + $0x1e8] sm:$0xff]
    %v627 = vld [vmem:[%s5 + $0x1f0] sm:$0xff]
    %v628 = vld [vmem:[%s5 + $0x1f8] sm:$0xff]
    %v629 = vld [vmem:[%s5 + $0x200] sm:$0xff]
    %v630 = vld [vmem:[%s5 + $0x208] sm:$0xff]
    %v631 = vld [vmem:[%s5 + $0x210] sm:$0xff]
    %v632 = vld [vmem:[%s5 + $0x218] sm:$0xff]
    %v633 = vld [vmem:[%s5 + $0x220] sm:$0xff]
    %v634 = vld [vmem:[%s5 + $0x228] sm:$0xff]
    %v635 = vld [vmem:[%s5 + $0x230] sm:$0xff]
    %v636 = vld [vmem:[%s5 + $0x238] sm:$0xff]
    %vm637 = vcmask 261120
    %v639 = vsel %vm637, %v270, 0
    %v642 = vsel %vm637, %v275, 0
    %v645 = vsel %vm637, %v280, 0
    %v648 = vsel %vm637, %v285, 0
    %v651 = vsel %vm637, %v290, 0
    %653 = vmatprep.subr.mxu0 %v494
    %654 = vmatpush1.msra.mxu0 %v493
    %655 = vmatprep.subr.mxu0 %v496
    %656 = vmatpush1.msra.mxu0 %v495
    %657 = vmatprep.subr.mxu0 %v498
    %658 = vmatpush1.msra.mxu0 %v497
    %659 = vmatprep.subr.mxu0 %v500
    %660 = vmatpush1.msra.mxu0 %v499
    %661 = vmatprep.subr.mxu0 %v502
    %662 = vmatpush1.msra.mxu0 %v501
    %663 = vmatprep.subr.mxu0 %v504
    %664 = vmatpush1.msra.mxu0 %v503
    %665 = vmatprep.subr.mxu0 %v506
    %666 = vmatpush1.msra.mxu0 %v505
    %667 = vmatprep.subr.mxu0 %v508
    %668 = vmatpush1.msra.mxu0 %v507
    %669 = vmatprep.subr.mxu0 %v510
    %670 = vmatpush1.msra.mxu0 %v509
    %671 = vmatprep.subr.mxu0 %v512
    %672 = vmatpush1.msra.mxu0 %v511
    %673 = vmatprep.subr.mxu0 %v514
    %674 = vmatpush1.msra.mxu0 %v513
    %675 = vmatprep.subr.mxu0 %v516
    %676 = vmatpush1.msra.mxu0 %v515
    %677 = vmatprep.subr.mxu0 %v518
    %678 = vmatpush1.msra.mxu0 %v517
    %679 = vmatprep.subr.mxu0 %v520
    %680 = vmatpush1.msra.mxu0 %v519
    %681 = vmatprep.subr.mxu0 %v522
    %682 = vmatpush1.msra.mxu0 %v521
    %683 = vmatprep.subr.mxu0 %v524
    %684 = vmatpush1.msra.mxu0 %v523
    %685 = vmatprep.subr.mxu0 %v526
    %686 = vmatpush1.msra.mxu0 %v525
    %687 = vmatprep.subr.mxu0 %v528
    %688 = vmatpush1.msra.mxu0 %v527
    %689 = vmatprep.subr.mxu0 %v530
    %690 = vmatpush1.msra.mxu0 %v529
    %691 = vmatprep.subr.mxu0 %v532
    %692 = vmatpush1.msra.mxu0 %v531
    %693 = vmatprep.subr.mxu0 %v534
    %694 = vmatpush1.msra.mxu0 %v533
    %695 = vmatprep.subr.mxu0 %v536
    %696 = vmatpush1.msra.mxu0 %v535
    %697 = vmatprep.subr.mxu0 %v538
    %698 = vmatpush1.msra.mxu0 %v537
    %699 = vmatprep.subr.mxu0 %v540
    %700 = vmatpush1.msra.mxu0 %v539
    %701 = vmatprep.subr.mxu0 %v542
    %702 = vmatpush1.msra.mxu0 %v541
    %703 = vmatprep.subr.mxu0 %v544
    %704 = vmatpush1.msra.mxu0 %v543
    %705 = vmatprep.subr.mxu0 %v546
    %706 = vmatpush1.msra.mxu0 %v545
    %707 = vmatprep.subr.mxu0 %v548
    %708 = vmatpush1.msra.mxu0 %v547
    %709 = vmatprep.subr.mxu0 %v550
    %710 = vmatpush1.msra.mxu0 %v549
    %711 = vmatprep.subr.mxu0 %v552
    %712 = vmatpush1.msra.mxu0 %v551
    %713 = vmatprep.subr.mxu0 %v554
    %714 = vmatpush1.msra.mxu0 %v553
    %715 = vmatprep.subr.mxu0 %v556
    %716 = vmatpush1.msra.mxu0 %v555
    %717 = vmatprep.mubr.f32.mxu0 %v177
    %718 = vmatmul.mubr.f32.gmra.mrb[0].mxu0 %v175
    %v719 = vpop.f32.mrb[0].mxu0
    %v720 = vadd.f32 0.0, %v719
    %v721 = vpop.f32.mrb[0].mxu0
    %v722 = vadd.f32 0.0, %v721
    %723 = vmatprep.mubr.f32.mxu0 %v183
    %724 = vmatmul.mubr.f32.gmra.mrb[0].mxu0 %v181
    %v725 = vpop.f32.mrb[0].mxu0
    %v726 = vadd.f32 0.0, %v725
    %v727 = vpop.f32.mrb[0].mxu0
    %v728 = vadd.f32 0.0, %v727
    %729 = vmatprep.mubr.f32.mxu0 %v189
    %730 = vmatmul.mubr.f32.gmra.mrb[0].mxu0 %v187
    %v731 = vpop.f32.mrb[0].mxu0
    %v732 = vadd.f32 0.0, %v731
    %v733 = vpop.f32.mrb[0].mxu0
    %v734 = vadd.f32 0.0, %v733
    %735 = vmatprep.mubr.f32.mxu0 %v195
    %736 = vmatmul.mubr.f32.gmra.mrb[0].mxu0 %v193
    %v737 = vpop.f32.mrb[0].mxu0
    %v738 = vadd.f32 0.0, %v737
    %v739 = vpop.f32.mrb[0].mxu0
    %v740 = vadd.f32 0.0, %v739
    %741 = vmatprep.mubr.f32.mxu0 %v201
    %742 = vmatmul.mubr.f32.gmra.mrb[0].mxu0 %v199
    %v743 = vpop.f32.mrb[0].mxu0
    %v744 = vadd.f32 0.0, %v743
    %v745 = vpop.f32.mrb[0].mxu0
    %v746 = vadd.f32 0.0, %v745
    %747 = vdwg.mxu0
    %748 = vmatprep.subr.mxu0 %v558
    %749 = vmatpush1.msra.mxu0 %v557
    %750 = vmatprep.subr.mxu0 %v560
    %751 = vmatpush1.msra.mxu0 %v559
    %752 = vmatprep.subr.mxu0 %v562
    %753 = vmatpush1.msra.mxu0 %v561
    %754 = vmatprep.subr.mxu0 %v564
    %755 = vmatpush1.msra.mxu0 %v563
    %756 = vmatprep.subr.mxu0 0.0
    %757 = vmatpush1.msra.mxu0 0.0
    %758 = vmatprep.subr.mxu0 0.0
    %759 = vmatpush1.msra.mxu0 0.0
    %760 = vmatprep.subr.mxu0 0.0
    %761 = vmatpush1.msra.mxu0 0.0
    %762 = vmatprep.subr.mxu0 0.0
    %763 = vmatpush1.msra.mxu0 0.0
    %764 = vmatprep.subr.mxu0 0.0
    %765 = vmatpush1.msra.mxu0 0.0
    %766 = vmatprep.subr.mxu0 0.0
    %767 = vmatpush1.msra.mxu0 0.0
    %768 = vmatprep.subr.mxu0 0.0
    %769 = vmatpush1.msra.mxu0 0.0
    %770 = vmatprep.subr.mxu0 0.0
    %771 = vmatpush1.msra.mxu0 0.0
    %772 = vmatprep.subr.mxu0 0.0
    %773 = vmatpush1.msra.mxu0 0.0
    %774 = vmatprep.subr.mxu0 0.0
    %775 = vmatpush1.msra.mxu0 0.0
    %776 = vmatprep.subr.mxu0 0.0
    %777 = vmatpush1.msra.mxu0 0.0
    %778 = vmatprep.subr.mxu0 0.0
    %779 = vmatpush1.msra.mxu0 0.0
    %780 = vmatprep.subr.mxu0 0.0
    %781 = vmatpush1.msra.mxu0 0.0
    %782 = vmatprep.subr.mxu0 0.0
    %783 = vmatpush1.msra.mxu0 0.0
    %784 = vmatprep.subr.mxu0 0.0
    %785 = vmatpush1.msra.mxu0 0.0
    %786 = vmatprep.subr.mxu0 0.0
    %787 = vmatpush1.msra.mxu0 0.0
    %788 = vmatprep.subr.mxu0 0.0
    %789 = vmatpush1.msra.mxu0 0.0
    %790 = vmatprep.subr.mxu0 0.0
    %791 = vmatpush1.msra.mxu0 0.0
    %792 = vmatprep.subr.mxu0 0.0
    %793 = vmatpush1.msra.mxu0 0.0
    %794 = vmatprep.subr.mxu0 0.0
    %795 = vmatpush1.msra.mxu0 0.0
    %796 = vmatprep.subr.mxu0 0.0
    %797 = vmatpush1.msra.mxu0 0.0
    %798 = vmatprep.subr.mxu0 0.0
    %799 = vmatpush1.msra.mxu0 0.0
    %800 = vmatprep.subr.mxu0 0.0
    %801 = vmatpush1.msra.mxu0 0.0
    %802 = vmatprep.subr.mxu0 0.0
    %803 = vmatpush1.msra.mxu0 0.0
    %804 = vmatprep.subr.mxu0 0.0
    %805 = vmatpush1.msra.mxu0 0.0
    %806 = vmatprep.subr.mxu0 0.0
    %807 = vmatpush1.msra.mxu0 0.0
    %808 = vmatprep.subr.mxu0 0.0
    %809 = vmatpush1.msra.mxu0 0.0
    %810 = vmatprep.subr.mxu0 0.0
    %811 = vmatpush1.msra.mxu0 0.0
    %812 = vmatprep.mubr.f32.mxu0 0.0
    %813 = vmatmul.mubr.f32.gmra.mrb[0].mxu0 %v639
    %v814 = vpop.f32.mrb[0].mxu0
    %v815 = vadd.f32 %v720, %v814
    %v816 = vpop.f32.mrb[0].mxu0
    %v817 = vadd.f32 %v722, %v816
    %818 = vmatprep.mubr.f32.mxu0 0.0
    %819 = vmatmul.mubr.f32.gmra.mrb[0].mxu0 %v642
    %v820 = vpop.f32.mrb[0].mxu0
    %v821 = vadd.f32 %v726, %v820
    %v822 = vpop.f32.mrb[0].mxu0
    %v823 = vadd.f32 %v728, %v822
    %824 = vmatprep.mubr.f32.mxu0 0.0
    %825 = vmatmul.mubr.f32.gmra.mrb[0].mxu0 %v645
    %v826 = vpop.f32.mrb[0].mxu0
    %v827 = vadd.f32 %v732, %v826
    %v828 = vpop.f32.mrb[0].mxu0
    %v829 = vadd.f32 %v734, %v828
    %830 = vmatprep.mubr.f32.mxu0 0.0
    %831 = vmatmul.mubr.f32.gmra.mrb[0].mxu0 %v648
    %v832 = vpop.f32.mrb[0].mxu0
    %v833 = vadd.f32 %v738, %v832
    %v834 = vpop.f32.mrb[0].mxu0
    %v835 = vadd.f32 %v740, %v834
    %836 = vmatprep.mubr.f32.mxu0 0.0
    %837 = vmatmul.mubr.f32.gmra.mrb[0].mxu0 %v651
    %v838 = vpop.f32.mrb[0].mxu0
    %v839 = vadd.f32 %v744, %v838
    %v840 = vpop.f32.mrb[0].mxu0
    %v841 = vadd.f32 %v746, %v840
    %842 = vdwg.mxu0
    %v844 = vsel %vm637, %v470, 0
    %v847 = vsel %vm637, %v475, 0
    %v850 = vsel %vm637, %v480, 0
    %v853 = vsel %vm637, %v485, 0
    %v856 = vsel %vm637, %v490, 0
    %858 = vmatprep.subr.mxu0 %v566
    %859 = vmatpush1.msra.mxu0 %v565
    %860 = vmatprep.subr.mxu0 %v568
    %861 = vmatpush1.msra.mxu0 %v567
    %862 = vmatprep.subr.mxu0 %v570
    %863 = vmatpush1.msra.mxu0 %v569
    %864 = vmatprep.subr.mxu0 %v572
    %865 = vmatpush1.msra.mxu0 %v571
    %866 = vmatprep.subr.mxu0 %v574
    %867 = vmatpush1.msra.mxu0 %v573
    %868 = vmatprep.subr.mxu0 %v576
    %869 = vmatpush1.msra.mxu0 %v575
    %870 = vmatprep.subr.mxu0 %v578
    %871 = vmatpush1.msra.mxu0 %v577
    %872 = vmatprep.subr.mxu0 %v580
    %873 = vmatpush1.msra.mxu0 %v579
    %874 = vmatprep.subr.mxu0 %v582
    %875 = vmatpush1.msra.mxu0 %v581
    %876 = vmatprep.subr.mxu0 %v584
    %877 = vmatpush1.msra.mxu0 %v583
    %878 = vmatprep.subr.mxu0 %v586
    %879 = vmatpush1.msra.mxu0 %v585
    %880 = vmatprep.subr.mxu0 %v588
    %881 = vmatpush1.msra.mxu0 %v587
    %882 = vmatprep.subr.mxu0 %v590
    %883 = vmatpush1.msra.mxu0 %v589
    %884 = vmatprep.subr.mxu0 %v592
    %885 = vmatpush1.msra.mxu0 %v591
    %886 = vmatprep.subr.mxu0 %v594
    %887 = vmatpush1.msra.mxu0 %v593
    %888 = vmatprep.subr.mxu0 %v596
    %889 = vmatpush1.msra.mxu0 %v595
    %890 = vmatprep.subr.mxu0 %v598
    %891 = vmatpush1.msra.mxu0 %v597
    %892 = vmatprep.subr.mxu0 %v600
    %893 = vmatpush1.msra.mxu0 %v599
    %894 = vmatprep.subr.mxu0 %v602
    %895 = vmatpush1.msra.mxu0 %v601
    %896 = vmatprep.subr.mxu0 %v604
    %897 = vmatpush1.msra.mxu0 %v603
    %898 = vmatprep.subr.mxu0 %v606
    %899 = vmatpush1.msra.mxu0 %v605
    %900 = vmatprep.subr.mxu0 %v608
    %901 = vmatpush1.msra.mxu0 %v607
    %902 = vmatprep.subr.mxu0 %v610
    %903 = vmatpush1.msra.mxu0 %v609
    %904 = vmatprep.subr.mxu0 %v612
    %905 = vmatpush1.msra.mxu0 %v611
    %906 = vmatprep.subr.mxu0 %v614
    %907 = vmatpush1.msra.mxu0 %v613
    %908 = vmatprep.subr.mxu0 %v616
    %909 = vmatpush1.msra.mxu0 %v615
    %910 = vmatprep.subr.mxu0 %v618
    %911 = vmatpush1.msra.mxu0 %v617
    %912 = vmatprep.subr.mxu0 %v620
    %913 = vmatpush1.msra.mxu0 %v619
    %914 = vmatprep.subr.mxu0 %v622
    %915 = vmatpush1.msra.mxu0 %v621
    %916 = vmatprep.subr.mxu0 %v624
    %917 = vmatpush1.msra.mxu0 %v623
    %918 = vmatprep.subr.mxu0 %v626
    %919 = vmatpush1.msra.mxu0 %v625
    %920 = vmatprep.subr.mxu0 %v628
    %921 = vmatpush1.msra.mxu0 %v627
    %922 = vmatprep.mubr.f32.mxu0 %v377
    %923 = vmatmul.mubr.f32.gmra.mrb[0].mxu0 %v375
    %v924 = vpop.f32.mrb[0].mxu0
    %v925 = vadd.f32 0.0, %v924
    %v926 = vpop.f32.mrb[0].mxu0
    %v927 = vadd.f32 0.0, %v926
    %928 = vmatprep.mubr.f32.mxu0 %v383
    %929 = vmatmul.mubr.f32.gmra.mrb[0].mxu0 %v381
    %v930 = vpop.f32.mrb[0].mxu0
    %v931 = vadd.f32 0.0, %v930
    %v932 = vpop.f32.mrb[0].mxu0
    %v933 = vadd.f32 0.0, %v932
    %934 = vmatprep.mubr.f32.mxu0 %v389
    %935 = vmatmul.mubr.f32.gmra.mrb[0].mxu0 %v387
    %v936 = vpop.f32.mrb[0].mxu0
    %v937 = vadd.f32 0.0, %v936
    %v938 = vpop.f32.mrb[0].mxu0
    %v939 = vadd.f32 0.0, %v938
    %940 = vmatprep.mubr.f32.mxu0 %v395
    %941 = vmatmul.mubr.f32.gmra.mrb[0].mxu0 %v393
    %v942 = vpop.f32.mrb[0].mxu0
    %v943 = vadd.f32 0.0, %v942
    %v944 = vpop.f32.mrb[0].mxu0
    %v945 = vadd.f32 0.0, %v944
    %946 = vmatprep.mubr.f32.mxu0 %v401
    %947 = vmatmul.mubr.f32.gmra.mrb[0].mxu0 %v399
    %v948 = vpop.f32.mrb[0].mxu0
    %v949 = vadd.f32 0.0, %v948
    %v950 = vpop.f32.mrb[0].mxu0
    %v951 = vadd.f32 0.0, %v950
    %952 = vdwg.mxu0
    %953 = vmatprep.subr.mxu0 %v630
    %954 = vmatpush1.msra.mxu0 %v629
    %955 = vmatprep.subr.mxu0 %v632
    %956 = vmatpush1.msra.mxu0 %v631
    %957 = vmatprep.subr.mxu0 %v634
    %958 = vmatpush1.msra.mxu0 %v633
    %959 = vmatprep.subr.mxu0 %v636
    %960 = vmatpush1.msra.mxu0 %v635
    %961 = vmatprep.subr.mxu0 0.0
    %962 = vmatpush1.msra.mxu0 0.0
    %963 = vmatprep.subr.mxu0 0.0
    %964 = vmatpush1.msra.mxu0 0.0
    %965 = vmatprep.subr.mxu0 0.0
    %966 = vmatpush1.msra.mxu0 0.0
    %967 = vmatprep.subr.mxu0 0.0
    %968 = vmatpush1.msra.mxu0 0.0
    %969 = vmatprep.subr.mxu0 0.0
    %970 = vmatpush1.msra.mxu0 0.0
    %971 = vmatprep.subr.mxu0 0.0
    %972 = vmatpush1.msra.mxu0 0.0
    %973 = vmatprep.subr.mxu0 0.0
    %974 = vmatpush1.msra.mxu0 0.0
    %975 = vmatprep.subr.mxu0 0.0
    %976 = vmatpush1.msra.mxu0 0.0
    %977 = vmatprep.subr.mxu0 0.0
    %978 = vmatpush1.msra.mxu0 0.0
    %979 = vmatprep.subr.mxu0 0.0
    %980 = vmatpush1.msra.mxu0 0.0
    %981 = vmatprep.subr.mxu0 0.0
    %982 = vmatpush1.msra.mxu0 0.0
    %983 = vmatprep.subr.mxu0 0.0
    %984 = vmatpush1.msra.mxu0 0.0
    %985 = vmatprep.subr.mxu0 0.0
    %986 = vmatpush1.msra.mxu0 0.0
    %987 = vmatprep.subr.mxu0 0.0
    %988 = vmatpush1.msra.mxu0 0.0
    %989 = vmatprep.subr.mxu0 0.0
    %990 = vmatpush1.msra.mxu0 0.0
    %991 = vmatprep.subr.mxu0 0.0
    %992 = vmatpush1.msra.mxu0 0.0
    %993 = vmatprep.subr.mxu0 0.0
    %994 = vmatpush1.msra.mxu0 0.0
    %995 = vmatprep.subr.mxu0 0.0
    %996 = vmatpush1.msra.mxu0 0.0
    %997 = vmatprep.subr.mxu0 0.0
    %998 = vmatpush1.msra.mxu0 0.0
    %999 = vmatprep.subr.mxu0 0.0
    %1000 = vmatpush1.msra.mxu0 0.0
    %1001 = vmatprep.subr.mxu0 0.0
    %1002 = vmatpush1.msra.mxu0 0.0
    %1003 = vmatprep.subr.mxu0 0.0
    %1004 = vmatpush1.msra.mxu0 0.0
    %1005 = vmatprep.subr.mxu0 0.0
    %1006 = vmatpush1.msra.mxu0 0.0
    %1007 = vmatprep.subr.mxu0 0.0
    %1008 = vmatpush1.msra.mxu0 0.0
    %1009 = vmatprep.subr.mxu0 0.0
    %1010 = vmatpush1.msra.mxu0 0.0
    %1011 = vmatprep.subr.mxu0 0.0
    %1012 = vmatpush1.msra.mxu0 0.0
    %1013 = vmatprep.subr.mxu0 0.0
    %1014 = vmatpush1.msra.mxu0 0.0
    %1015 = vmatprep.subr.mxu0 0.0
    %1016 = vmatpush1.msra.mxu0 0.0
    %1017 = vmatprep.mubr.f32.mxu0 0.0
    %1018 = vmatmul.mubr.f32.gmra.mrb[0].mxu0 %v844
    %v1019 = vpop.f32.mrb[0].mxu0
    %v1020 = vadd.f32 %v925, %v1019
    %v1021 = vpop.f32.mrb[0].mxu0
    %v1022 = vadd.f32 %v927, %v1021
    %1023 = vmatprep.mubr.f32.mxu0 0.0
    %1024 = vmatmul.mubr.f32.gmra.mrb[0].mxu0 %v847
    %v1025 = vpop.f32.mrb[0].mxu0
    %v1026 = vadd.f32 %v931, %v1025
    %v1027 = vpop.f32.mrb[0].mxu0
    %v1028 = vadd.f32 %v933, %v1027
    %1029 = vmatprep.mubr.f32.mxu0 0.0
    %1030 = vmatmul.mubr.f32.gmra.mrb[0].mxu0 %v850
    %v1031 = vpop.f32.mrb[0].mxu0
    %v1032 = vadd.f32 %v937, %v1031
    %v1033 = vpop.f32.mrb[0].mxu0
    %v1034 = vadd.f32 %v939, %v1033
    %1035 = vmatprep.mubr.f32.mxu0 0.0
    %1036 = vmatmul.mubr.f32.gmra.mrb[0].mxu0 %v853
    %v1037 = vpop.f32.mrb[0].mxu0
    %v1038 = vadd.f32 %v943, %v1037
    %v1039 = vpop.f32.mrb[0].mxu0
    %v1040 = vadd.f32 %v945, %v1039
    %1041 = vmatprep.mubr.f32.mxu0 0.0
    %1042 = vmatmul.mubr.f32.gmra.mrb[0].mxu0 %v856
    %v1043 = vpop.f32.mrb[0].mxu0
    %v1044 = vadd.f32 %v949, %v1043
    %v1045 = vpop.f32.mrb[0].mxu0
    %v1046 = vadd.f32 %v951, %v1045
    %1047 = vdwg.mxu0
    %v1048 = vsub.f32 %v815, %v1020
    %v1049 = vsub.f32 %v817, %v1022
    %v1050 = vsub.f32 %v821, %v1026
    %v1051 = vsub.f32 %v823, %v1028
    %v1052 = vsub.f32 %v827, %v1032
    %v1053 = vsub.f32 %v829, %v1034
    %v1054 = vsub.f32 %v833, %v1038
    %v1055 = vsub.f32 %v835, %v1040
    %v1056 = vsub.f32 %v839, %v1044
    %v1057 = vsub.f32 %v841, %v1046
    %1058 = vmatprep.subr.mxu0 %v494
    %1059 = vmatpush1.msra.mxu0 %v493
    %1060 = vmatprep.subr.mxu0 %v496
    %1061 = vmatpush1.msra.mxu0 %v495
    %1062 = vmatprep.subr.mxu0 %v498
    %1063 = vmatpush1.msra.mxu0 %v497
    %1064 = vmatprep.subr.mxu0 %v500
    %1065 = vmatpush1.msra.mxu0 %v499
    %1066 = vmatprep.subr.mxu0 %v502
    %1067 = vmatpush1.msra.mxu0 %v501
    %1068 = vmatprep.subr.mxu0 %v504
    %1069 = vmatpush1.msra.mxu0 %v503
    %1070 = vmatprep.subr.mxu0 %v506
    %1071 = vmatpush1.msra.mxu0 %v505
    %1072 = vmatprep.subr.mxu0 %v508
    %1073 = vmatpush1.msra.mxu0 %v507
    %1074 = vmatprep.subr.mxu0 %v510
    %1075 = vmatpush1.msra.mxu0 %v509
    %1076 = vmatprep.subr.mxu0 %v512
    %1077 = vmatpush1.msra.mxu0 %v511
    %1078 = vmatprep.subr.mxu0 %v514
    %1079 = vmatpush1.msra.mxu0 %v513
    %1080 = vmatprep.subr.mxu0 %v516
    %1081 = vmatpush1.msra.mxu0 %v515
    %1082 = vmatprep.subr.mxu0 %v518
    %1083 = vmatpush1.msra.mxu0 %v517
    %1084 = vmatprep.subr.mxu0 %v520
    %1085 = vmatpush1.msra.mxu0 %v519
    %1086 = vmatprep.subr.mxu0 %v522
    %1087 = vmatpush1.msra.mxu0 %v521
    %1088 = vmatprep.subr.mxu0 %v524
    %1089 = vmatpush1.msra.mxu0 %v523
    %1090 = vmatprep.subr.mxu0 %v526
    %1091 = vmatpush1.msra.mxu0 %v525
    %1092 = vmatprep.subr.mxu0 %v528
    %1093 = vmatpush1.msra.mxu0 %v527
    %1094 = vmatprep.subr.mxu0 %v530
    %1095 = vmatpush1.msra.mxu0 %v529
    %1096 = vmatprep.subr.mxu0 %v532
    %1097 = vmatpush1.msra.mxu0 %v531
    %1098 = vmatprep.subr.mxu0 %v534
    %1099 = vmatpush1.msra.mxu0 %v533
    %1100 = vmatprep.subr.mxu0 %v536
    %1101 = vmatpush1.msra.mxu0 %v535
    %1102 = vmatprep.subr.mxu0 %v538
    %1103 = vmatpush1.msra.mxu0 %v537
    %1104 = vmatprep.subr.mxu0 %v540
    %1105 = vmatpush1.msra.mxu0 %v539
    %1106 = vmatprep.subr.mxu0 %v542
    %1107 = vmatpush1.msra.mxu0 %v541
    %1108 = vmatprep.subr.mxu0 %v544
    %1109 = vmatpush1.msra.mxu0 %v543
    %1110 = vmatprep.subr.mxu0 %v546
    %1111 = vmatpush1.msra.mxu0 %v545
    %1112 = vmatprep.subr.mxu0 %v548
    %1113 = vmatpush1.msra.mxu0 %v547
    %1114 = vmatprep.subr.mxu0 %v550
    %1115 = vmatpush1.msra.mxu0 %v549
    %1116 = vmatprep.subr.mxu0 %v552
    %1117 = vmatpush1.msra.mxu0 %v551
    %1118 = vmatprep.subr.mxu0 %v554
    %1119 = vmatpush1.msra.mxu0 %v553
    %1120 = vmatprep.subr.mxu0 %v556
    %1121 = vmatpush1.msra.mxu0 %v555
    %1122 = vmatprep.mubr.f32.mxu0 %v377
    %1123 = vmatmul.mubr.f32.gmra.mrb[0].mxu0 %v375
    %v1124 = vpop.f32.mrb[0].mxu0
    %v1125 = vadd.f32 0.0, %v1124
    %v1126 = vpop.f32.mrb[0].mxu0
    %v1127 = vadd.f32 0.0, %v1126
    %1128 = vmatprep.mubr.f32.mxu0 %v383
    %1129 = vmatmul.mubr.f32.gmra.mrb[0].mxu0 %v381
    %v1130 = vpop.f32.mrb[0].mxu0
    %v1131 = vadd.f32 0.0, %v1130
    %v1132 = vpop.f32.mrb[0].mxu0
    %v1133 = vadd.f32 0.0, %v1132
    %1134 = vmatprep.mubr.f32.mxu0 %v389
    %1135 = vmatmul.mubr.f32.gmra.mrb[0].mxu0 %v387
    %v1136 = vpop.f32.mrb[0].mxu0
    %v1137 = vadd.f32 0.0, %v1136
    %v1138 = vpop.f32.mrb[0].mxu0
    %v1139 = vadd.f32 0.0, %v1138
    %1140 = vmatprep.mubr.f32.mxu0 %v395
    %1141 = vmatmul.mubr.f32.gmra.mrb[0].mxu0 %v393
    %v1142 = vpop.f32.mrb[0].mxu0
    %v1143 = vadd.f32 0.0, %v1142
    %v1144 = vpop.f32.mrb[0].mxu0
    %v1145 = vadd.f32 0.0, %v1144
    %1146 = vmatprep.mubr.f32.mxu0 %v401
    %1147 = vmatmul.mubr.f32.gmra.mrb[0].mxu0 %v399
    %v1148 = vpop.f32.mrb[0].mxu0
    %v1149 = vadd.f32 0.0, %v1148
    %v1150 = vpop.f32.mrb[0].mxu0
    %v1151 = vadd.f32 0.0, %v1150
    %1152 = vdwg.mxu0
    %1153 = vmatprep.subr.mxu0 %v558
    %1154 = vmatpush1.msra.mxu0 %v557
    %1155 = vmatprep.subr.mxu0 %v560
    %1156 = vmatpush1.msra.mxu0 %v559
    %1157 = vmatprep.subr.mxu0 %v562
    %1158 = vmatpush1.msra.mxu0 %v561
    %1159 = vmatprep.subr.mxu0 %v564
    %1160 = vmatpush1.msra.mxu0 %v563
    %1161 = vmatprep.subr.mxu0 0.0
    %1162 = vmatpush1.msra.mxu0 0.0
    %1163 = vmatprep.subr.mxu0 0.0
    %1164 = vmatpush1.msra.mxu0 0.0
    %1165 = vmatprep.subr.mxu0 0.0
    %1166 = vmatpush1.msra.mxu0 0.0
    %1167 = vmatprep.subr.mxu0 0.0
    %1168 = vmatpush1.msra.mxu0 0.0
    %1169 = vmatprep.subr.mxu0 0.0
    %1170 = vmatpush1.msra.mxu0 0.0
    %1171 = vmatprep.subr.mxu0 0.0
    %1172 = vmatpush1.msra.mxu0 0.0
    %1173 = vmatprep.subr.mxu0 0.0
    %1174 = vmatpush1.msra.mxu0 0.0
    %1175 = vmatprep.subr.mxu0 0.0
    %1176 = vmatpush1.msra.mxu0 0.0
    %1177 = vmatprep.subr.mxu0 0.0
    %1178 = vmatpush1.msra.mxu0 0.0
    %1179 = vmatprep.subr.mxu0 0.0
    %1180 = vmatpush1.msra.mxu0 0.0
    %1181 = vmatprep.subr.mxu0 0.0
    %1182 = vmatpush1.msra.mxu0 0.0
    %1183 = vmatprep.subr.mxu0 0.0
    %1184 = vmatpush1.msra.mxu0 0.0
    %1185 = vmatprep.subr.mxu0 0.0
    %1186 = vmatpush1.msra.mxu0 0.0
    %1187 = vmatprep.subr.mxu0 0.0
    %1188 = vmatpush1.msra.mxu0 0.0
    %1189 = vmatprep.subr.mxu0 0.0
    %1190 = vmatpush1.msra.mxu0 0.0
    %1191 = vmatprep.subr.mxu0 0.0
    %1192 = vmatpush1.msra.mxu0 0.0
    %1193 = vmatprep.subr.mxu0 0.0
    %1194 = vmatpush1.msra.mxu0 0.0
    %1195 = vmatprep.subr.mxu0 0.0
    %1196 = vmatpush1.msra.mxu0 0.0
    %1197 = vmatprep.subr.mxu0 0.0
    %1198 = vmatpush1.msra.mxu0 0.0
    %1199 = vmatprep.subr.mxu0 0.0
    %1200 = vmatpush1.msra.mxu0 0.0
    %1201 = vmatprep.subr.mxu0 0.0
    %1202 = vmatpush1.msra.mxu0 0.0
    %1203 = vmatprep.subr.mxu0 0.0
    %1204 = vmatpush1.msra.mxu0 0.0
    %1205 = vmatprep.subr.mxu0 0.0
    %1206 = vmatpush1.msra.mxu0 0.0
    %1207 = vmatprep.subr.mxu0 0.0
    %1208 = vmatpush1.msra.mxu0 0.0
    %1209 = vmatprep.subr.mxu0 0.0
    %1210 = vmatpush1.msra.mxu0 0.0
    %1211 = vmatprep.subr.mxu0 0.0
    %1212 = vmatpush1.msra.mxu0 0.0
    %1213 = vmatprep.subr.mxu0 0.0
    %1214 = vmatpush1.msra.mxu0 0.0
    %1215 = vmatprep.subr.mxu0 0.0
    %1216 = vmatpush1.msra.mxu0 0.0
    %1217 = vmatprep.mubr.f32.mxu0 0.0
    %1218 = vmatmul.mubr.f32.gmra.mrb[0].mxu0 %v844
    %v1219 = vpop.f32.mrb[0].mxu0
    %v1220 = vadd.f32 %v1125, %v1219
    %v1221 = vpop.f32.mrb[0].mxu0
    %v1222 = vadd.f32 %v1127, %v1221
    %1223 = vmatprep.mubr.f32.mxu0 0.0
    %1224 = vmatmul.mubr.f32.gmra.mrb[0].mxu0 %v847
    %v1225 = vpop.f32.mrb[0].mxu0
    %v1226 = vadd.f32 %v1131, %v1225
    %v1227 = vpop.f32.mrb[0].mxu0
    %v1228 = vadd.f32 %v1133, %v1227
    %1229 = vmatprep.mubr.f32.mxu0 0.0
    %1230 = vmatmul.mubr.f32.gmra.mrb[0].mxu0 %v850
    %v1231 = vpop.f32.mrb[0].mxu0
    %v1232 = vadd.f32 %v1137, %v1231
    %v1233 = vpop.f32.mrb[0].mxu0
    %v1234 = vadd.f32 %v1139, %v1233
    %1235 = vmatprep.mubr.f32.mxu0 0.0
    %1236 = vmatmul.mubr.f32.gmra.mrb[0].mxu0 %v853
    %v1237 = vpop.f32.mrb[0].mxu0
    %v1238 = vadd.f32 %v1143, %v1237
    %v1239 = vpop.f32.mrb[0].mxu0
    %v1240 = vadd.f32 %v1145, %v1239
    %1241 = vmatprep.mubr.f32.mxu0 0.0
    %1242 = vmatmul.mubr.f32.gmra.mrb[0].mxu0 %v856
    %v1243 = vpop.f32.mrb[0].mxu0
    %v1244 = vadd.f32 %v1149, %v1243
    %v1245 = vpop.f32.mrb[0].mxu0
    %v1246 = vadd.f32 %v1151, %v1245
    %1247 = vdwg.mxu0
    %1248 = vmatprep.subr.mxu0 %v566
    %1249 = vmatpush1.msra.mxu0 %v565
    %1250 = vmatprep.subr.mxu0 %v568
    %1251 = vmatpush1.msra.mxu0 %v567
    %1252 = vmatprep.subr.mxu0 %v570
    %1253 = vmatpush1.msra.mxu0 %v569
    %1254 = vmatprep.subr.mxu0 %v572
    %1255 = vmatpush1.msra.mxu0 %v571
    %1256 = vmatprep.subr.mxu0 %v574
    %1257 = vmatpush1.msra.mxu0 %v573
    %1258 = vmatprep.subr.mxu0 %v576
    %1259 = vmatpush1.msra.mxu0 %v575
    %1260 = vmatprep.subr.mxu0 %v578
    %1261 = vmatpush1.msra.mxu0 %v577
    %1262 = vmatprep.subr.mxu0 %v580
    %1263 = vmatpush1.msra.mxu0 %v579
    %1264 = vmatprep.subr.mxu0 %v582
    %1265 = vmatpush1.msra.mxu0 %v581
    %1266 = vmatprep.subr.mxu0 %v584
    %1267 = vmatpush1.msra.mxu0 %v583
    %1268 = vmatprep.subr.mxu0 %v586
    %1269 = vmatpush1.msra.mxu0 %v585
    %1270 = vmatprep.subr.mxu0 %v588
    %1271 = vmatpush1.msra.mxu0 %v587
    %1272 = vmatprep.subr.mxu0 %v590
    %1273 = vmatpush1.msra.mxu0 %v589
    %1274 = vmatprep.subr.mxu0 %v592
    %1275 = vmatpush1.msra.mxu0 %v591
    %1276 = vmatprep.subr.mxu0 %v594
    %1277 = vmatpush1.msra.mxu0 %v593
    %1278 = vmatprep.subr.mxu0 %v596
    %1279 = vmatpush1.msra.mxu0 %v595
    %1280 = vmatprep.subr.mxu0 %v598
    %1281 = vmatpush1.msra.mxu0 %v597
    %1282 = vmatprep.subr.mxu0 %v600
    %1283 = vmatpush1.msra.mxu0 %v599
    %1284 = vmatprep.subr.mxu0 %v602
    %1285 = vmatpush1.msra.mxu0 %v601
    %1286 = vmatprep.subr.mxu0 %v604
    %1287 = vmatpush1.msra.mxu0 %v603
    %1288 = vmatprep.subr.mxu0 %v606
    %1289 = vmatpush1.msra.mxu0 %v605
    %1290 = vmatprep.subr.mxu0 %v608
    %1291 = vmatpush1.msra.mxu0 %v607
    %1292 = vmatprep.subr.mxu0 %v610
    %1293 = vmatpush1.msra.mxu0 %v609
    %1294 = vmatprep.subr.mxu0 %v612
    %1295 = vmatpush1.msra.mxu0 %v611
    %1296 = vmatprep.subr.mxu0 %v614
    %1297 = vmatpush1.msra.mxu0 %v613
    %1298 = vmatprep.subr.mxu0 %v616
    %1299 = vmatpush1.msra.mxu0 %v615
    %1300 = vmatprep.subr.mxu0 %v618
    %1301 = vmatpush1.msra.mxu0 %v617
    %1302 = vmatprep.subr.mxu0 %v620
    %1303 = vmatpush1.msra.mxu0 %v619
    %1304 = vmatprep.subr.mxu0 %v622
    %1305 = vmatpush1.msra.mxu0 %v621
    %1306 = vmatprep.subr.mxu0 %v624
    %1307 = vmatpush1.msra.mxu0 %v623
    %1308 = vmatprep.subr.mxu0 %v626
    %1309 = vmatpush1.msra.mxu0 %v625
    %1310 = vmatprep.subr.mxu0 %v628
    %1311 = vmatpush1.msra.mxu0 %v627
    %1312 = vmatprep.mubr.f32.mxu0 %v177
    %1313 = vmatmul.mubr.f32.gmra.mrb[0].mxu0 %v175
    %v1314 = vpop.f32.mrb[0].mxu0
    %v1315 = vadd.f32 %v1220, %v1314
    %v1316 = vpop.f32.mrb[0].mxu0
    %v1317 = vadd.f32 %v1222, %v1316
    %1318 = vmatprep.mubr.f32.mxu0 %v183
    %1319 = vmatmul.mubr.f32.gmra.mrb[0].mxu0 %v181
    %v1320 = vpop.f32.mrb[0].mxu0
    %v1321 = vadd.f32 %v1226, %v1320
    %v1322 = vpop.f32.mrb[0].mxu0
    %v1323 = vadd.f32 %v1228, %v1322
    %1324 = vmatprep.mubr.f32.mxu0 %v189
    %1325 = vmatmul.mubr.f32.gmra.mrb[0].mxu0 %v187
    %v1326 = vpop.f32.mrb[0].mxu0
    %v1327 = vadd.f32 %v1232, %v1326
    %v1328 = vpop.f32.mrb[0].mxu0
    %v1329 = vadd.f32 %v1234, %v1328
    %1330 = vmatprep.mubr.f32.mxu0 %v195
    %1331 = vmatmul.mubr.f32.gmra.mrb[0].mxu0 %v193
    %v1332 = vpop.f32.mrb[0].mxu0
    %v1333 = vadd.f32 %v1238, %v1332
    %v1334 = vpop.f32.mrb[0].mxu0
    %v1335 = vadd.f32 %v1240, %v1334
    %1336 = vmatprep.mubr.f32.mxu0 %v201
    %1337 = vmatmul.mubr.f32.gmra.mrb[0].mxu0 %v199
    %v1338 = vpop.f32.mrb[0].mxu0
    %v1339 = vadd.f32 %v1244, %v1338
    %v1340 = vpop.f32.mrb[0].mxu0
    %v1341 = vadd.f32 %v1246, %v1340
    %1342 = vdwg.mxu0
    %1343 = vmatprep.subr.mxu0 %v630
    %1344 = vmatpush1.msra.mxu0 %v629
    %1345 = vmatprep.subr.mxu0 %v632
    %1346 = vmatpush1.msra.mxu0 %v631
    %1347 = vmatprep.subr.mxu0 %v634
    %1348 = vmatpush1.msra.mxu0 %v633
    %1349 = vmatprep.subr.mxu0 %v636
    %1350 = vmatpush1.msra.mxu0 %v635
    %1351 = vmatprep.subr.mxu0 0.0
    %1352 = vmatpush1.msra.mxu0 0.0
    %1353 = vmatprep.subr.mxu0 0.0
    %1354 = vmatpush1.msra.mxu0 0.0
    %1355 = vmatprep.subr.mxu0 0.0
    %1356 = vmatpush1.msra.mxu0 0.0
    %1357 = vmatprep.subr.mxu0 0.0
    %1358 = vmatpush1.msra.mxu0 0.0
    %1359 = vmatprep.subr.mxu0 0.0
    %1360 = vmatpush1.msra.mxu0 0.0
    %1361 = vmatprep.subr.mxu0 0.0
    %1362 = vmatpush1.msra.mxu0 0.0
    %1363 = vmatprep.subr.mxu0 0.0
    %1364 = vmatpush1.msra.mxu0 0.0
    %1365 = vmatprep.subr.mxu0 0.0
    %1366 = vmatpush1.msra.mxu0 0.0
    %1367 = vmatprep.subr.mxu0 0.0
    %1368 = vmatpush1.msra.mxu0 0.0
    %1369 = vmatprep.subr.mxu0 0.0
    %1370 = vmatpush1.msra.mxu0 0.0
    %1371 = vmatprep.subr.mxu0 0.0
    %1372 = vmatpush1.msra.mxu0 0.0
    %1373 = vmatprep.subr.mxu0 0.0
    %1374 = vmatpush1.msra.mxu0 0.0
    %1375 = vmatprep.subr.mxu0 0.0
    %1376 = vmatpush1.msra.mxu0 0.0
    %1377 = vmatprep.subr.mxu0 0.0
    %1378 = vmatpush1.msra.mxu0 0.0
    %1379 = vmatprep.subr.mxu0 0.0
    %1380 = vmatpush1.msra.mxu0 0.0
    %1381 = vmatprep.subr.mxu0 0.0
    %1382 = vmatpush1.msra.mxu0 0.0
    %1383 = vmatprep.subr.mxu0 0.0
    %1384 = vmatpush1.msra.mxu0 0.0
    %1385 = vmatprep.subr.mxu0 0.0
    %1386 = vmatpush1.msra.mxu0 0.0
    %1387 = vmatprep.subr.mxu0 0.0
    %1388 = vmatpush1.msra.mxu0 0.0
    %1389 = vmatprep.subr.mxu0 0.0
    %1390 = vmatpush1.msra.mxu0 0.0
    %1391 = vmatprep.subr.mxu0 0.0
    %1392 = vmatpush1.msra.mxu0 0.0
    %1393 = vmatprep.subr.mxu0 0.0
    %1394 = vmatpush1.msra.mxu0 0.0
    %1395 = vmatprep.subr.mxu0 0.0
    %1396 = vmatpush1.msra.mxu0 0.0
    %1397 = vmatprep.subr.mxu0 0.0
    %1398 = vmatpush1.msra.mxu0 0.0
    %1399 = vmatprep.subr.mxu0 0.0
    %1400 = vmatpush1.msra.mxu0 0.0
    %1401 = vmatprep.subr.mxu0 0.0
    %1402 = vmatpush1.msra.mxu0 0.0
    %1403 = vmatprep.subr.mxu0 0.0
    %1404 = vmatpush1.msra.mxu0 0.0
    %1405 = vmatprep.subr.mxu0 0.0
    %1406 = vmatpush1.msra.mxu0 0.0
    %1407 = vmatprep.mubr.f32.mxu0 0.0
    %1408 = vmatmul.mubr.f32.gmra.mrb[0].mxu0 %v639
    %v1409 = vpop.f32.mrb[0].mxu0
    %v1410 = vadd.f32 %v1315, %v1409
    %v1411 = vpop.f32.mrb[0].mxu0
    %v1412 = vadd.f32 %v1317, %v1411
    %1413 = vmatprep.mubr.f32.mxu0 0.0
    %1414 = vmatmul.mubr.f32.gmra.mrb[0].mxu0 %v642
    %v1415 = vpop.f32.mrb[0].mxu0
    %v1416 = vadd.f32 %v1321, %v1415
    %v1417 = vpop.f32.mrb[0].mxu0
    %v1418 = vadd.f32 %v1323, %v1417
    %1419 = vmatprep.mubr.f32.mxu0 0.0
    %1420 = vmatmul.mubr.f32.gmra.mrb[0].mxu0 %v645
    %v1421 = vpop.f32.mrb[0].mxu0
    %v1422 = vadd.f32 %v1327, %v1421
    %v1423 = vpop.f32.mrb[0].mxu0
    %v1424 = vadd.f32 %v1329, %v1423
    %1425 = vmatprep.mubr.f32.mxu0 0.0
    %1426 = vmatmul.mubr.f32.gmra.mrb[0].mxu0 %v648
    %v1427 = vpop.f32.mrb[0].mxu0
    %v1428 = vadd.f32 %v1333, %v1427
    %v1429 = vpop.f32.mrb[0].mxu0
    %v1430 = vadd.f32 %v1335, %v1429
    %1431 = vmatprep.mubr.f32.mxu0 0.0
    %1432 = vmatmul.mubr.f32.gmra.mrb[0].mxu0 %v651
    %v1433 = vpop.f32.mrb[0].mxu0
    %v1434 = vadd.f32 %v1339, %v1433
    %v1435 = vpop.f32.mrb[0].mxu0
    %v1436 = vadd.f32 %v1341, %v1435
    %1437 = vdwg.mxu0
    %v1438 = vld [vmem:[%s1] sm:$0xff]
    %v1439 = vld [vmem:[%s1 + $0x8] sm:$0xff]
    %v1440 = vld [vmem:[%s1 + $0x10] sm:$0xff]
    %v1441 = vld [vmem:[%s1 + $0x18] sm:$0xff]
    %v1442 = vld [vmem:[%s1 + $0x20] sm:$0xff]
    %v1443 = vld [vmem:[%s1 + $0x28] sm:$0xff]
    %v1444 = vld [vmem:[%s1 + $0x30] sm:$0xff]
    %v1445 = vld [vmem:[%s1 + $0x38] sm:$0xff]
    %v1446 = vld [vmem:[%s1 + $0x40] sm:$0xf]
    %v1447 = vld [vmem:[%s1 + $0x48] sm:$0xf]
    %v1448 = vmul.f32 %v1048, %v1438
    %v1449 = vmul.f32 %v1049, %v1439
    %v1450 = vmul.f32 %v1050, %v1440
    %v1451 = vmul.f32 %v1051, %v1441
    %v1452 = vmul.f32 %v1052, %v1442
    %v1453 = vmul.f32 %v1053, %v1443
    %v1454 = vmul.f32 %v1054, %v1444
    %v1455 = vmul.f32 %v1055, %v1445
    %v1456 = vmul.f32 %v1056, %v1446
    %v1457 = vmul.f32 %v1057, %v1447
    %v1458 = vmul.f32 %v1410, %v1438
    %v1459 = vmul.f32 %v1412, %v1439
    %v1460 = vmul.f32 %v1416, %v1440
    %v1461 = vmul.f32 %v1418, %v1441
    %v1462 = vmul.f32 %v1422, %v1442
    %v1463 = vmul.f32 %v1424, %v1443
    %v1464 = vmul.f32 %v1428, %v1444
    %v1465 = vmul.f32 %v1430, %v1445
    %v1466 = vmul.f32 %v1434, %v1446
    %v1467 = vmul.f32 %v1436, %v1447
    %v1469 = vsel %vm98, %v1466, 0
    %v1472 = vsel %vm98, %v1467, 0
    %1474 = vmatprep.subr.mxu0 %v1459
    %1475 = vmatpush1.msra.mxu0 %v1458
    %1476 = vmatprep.subr.mxu0 %v1461
    %1477 = vmatpush1.msra.mxu0 %v1460
    %1478 = vmatprep.subr.mxu0 %v1463
    %1479 = vmatpush1.msra.mxu0 %v1462
    %1480 = vmatprep.subr.mxu0 %v1465
    %1481 = vmatpush1.msra.mxu0 %v1464
    %1482 = vmatprep.subr.mxu0 %v1472
    %1483 = vmatpush1.msra.mxu0 %v1469
    %1484 = vmatprep.subr.mxu0 0.0
    %1485 = vmatpush1.msra.mxu0 0.0
    %1486 = vmatprep.subr.mxu0 0.0
    %1487 = vmatpush1.msra.mxu0 0.0
    %1488 = vmatprep.subr.mxu0 0.0
    %1489 = vmatpush1.msra.mxu0 0.0
    %1490 = vmatprep.subr.mxu0 0.0
    %1491 = vmatpush1.msra.mxu0 0.0
    %1492 = vmatprep.subr.mxu0 0.0
    %1493 = vmatpush1.msra.mxu0 0.0
    %1494 = vmatprep.subr.mxu0 0.0
    %1495 = vmatpush1.msra.mxu0 0.0
    %1496 = vmatprep.subr.mxu0 0.0
    %1497 = vmatpush1.msra.mxu0 0.0
    %1498 = vmatprep.subr.mxu0 0.0
    %1499 = vmatpush1.msra.mxu0 0.0
    %1500 = vmatprep.subr.mxu0 0.0
    %1501 = vmatpush1.msra.mxu0 0.0
    %1502 = vmatprep.subr.mxu0 0.0
    %1503 = vmatpush1.msra.mxu0 0.0
    %1504 = vmatprep.subr.mxu0 0.0
    %1505 = vmatpush1.msra.mxu0 0.0
    %1506 = vmatprep.subr.mxu0 0.0
    %1507 = vmatpush1.msra.mxu0 0.0
    %1508 = vmatprep.subr.mxu0 0.0
    %1509 = vmatpush1.msra.mxu0 0.0
    %1510 = vmatprep.subr.mxu0 0.0
    %1511 = vmatpush1.msra.mxu0 0.0
    %1512 = vmatprep.subr.mxu0 0.0
    %1513 = vmatpush1.msra.mxu0 0.0
    %1514 = vmatprep.subr.mxu0 0.0
    %1515 = vmatpush1.msra.mxu0 0.0
    %1516 = vmatprep.subr.mxu0 0.0
    %1517 = vmatpush1.msra.mxu0 0.0
    %1518 = vmatprep.subr.mxu0 0.0
    %1519 = vmatpush1.msra.mxu0 0.0
    %1520 = vmatprep.subr.mxu0 0.0
    %1521 = vmatpush1.msra.mxu0 0.0
    %1522 = vmatprep.subr.mxu0 0.0
    %1523 = vmatpush1.msra.mxu0 0.0
    %1524 = vmatprep.subr.mxu0 0.0
    %1525 = vmatpush1.msra.mxu0 0.0
    %1526 = vmatprep.subr.mxu0 0.0
    %1527 = vmatpush1.msra.mxu0 0.0
    %1528 = vmatprep.subr.mxu0 0.0
    %1529 = vmatpush1.msra.mxu0 0.0
    %1530 = vmatprep.subr.mxu0 0.0
    %1531 = vmatpush1.msra.mxu0 0.0
    %1532 = vmatprep.subr.mxu0 0.0
    %1533 = vmatpush1.msra.mxu0 0.0
    %1534 = vmatprep.subr.mxu0 0.0
    %1535 = vmatpush1.msra.mxu0 0.0
    %1536 = vmatprep.subr.mxu0 0.0
    %1537 = vmatpush1.msra.mxu0 0.0
    %1538 = vmatprep.mubr.f32.mxu0 0.0
    %1539 = vmatmul.mubr.f32.gmra.mrb[0].mxu0 %v294
    %v1540 = vpop.f32.mrb[0].mxu0
    %v1541 = vadd.f32 0.0, %v1540
    %v1542 = vpop.f32.mrb[0].mxu0
    %v1543 = vadd.f32 0.0, %v1542
    %1544 = vmatprep.mubr.f32.mxu0 0.0
    %1545 = vmatmul.mubr.f32.gmra.mrb[0].mxu0 %v297
    %v1546 = vpop.f32.mrb[0].mxu0
    %v1547 = vadd.f32 0.0, %v1546
    %v1548 = vpop.f32.mrb[0].mxu0
    %v1549 = vadd.f32 0.0, %v1548
    %1550 = vmatprep.mubr.f32.mxu0 0.0
    %1551 = vmatmul.mubr.f32.gmra.mrb[0].mxu0 %v300
    %v1552 = vpop.f32.mrb[0].mxu0
    %v1553 = vadd.f32 0.0, %v1552
    %v1554 = vpop.f32.mrb[0].mxu0
    %v1555 = vadd.f32 0.0, %v1554
    %1556 = vmatprep.mubr.f32.mxu0 0.0
    %1557 = vmatmul.mubr.f32.gmra.mrb[0].mxu0 %v303
    %v1558 = vpop.f32.mrb[0].mxu0
    %v1559 = vadd.f32 0.0, %v1558
    %v1560 = vpop.f32.mrb[0].mxu0
    %v1561 = vadd.f32 0.0, %v1560
    %1562 = vmatprep.mubr.f32.mxu0 0.0
    %1563 = vmatmul.mubr.f32.gmra.mrb[0].mxu0 %v306
    %v1564 = vpop.f32.mrb[0].mxu0
    %v1565 = vadd.f32 0.0, %v1564
    %v1566 = vpop.f32.mrb[0].mxu0
    %v1567 = vadd.f32 0.0, %v1566
    %1568 = vdwg.mxu0
    %v1570 = vsel %vm98, %v1456, 0
    %v1573 = vsel %vm98, %v1457, 0
    %1575 = vmatprep.subr.mxu0 %v1449
    %1576 = vmatpush1.msra.mxu0 %v1448
    %1577 = vmatprep.subr.mxu0 %v1451
    %1578 = vmatpush1.msra.mxu0 %v1450
    %1579 = vmatprep.subr.mxu0 %v1453
    %1580 = vmatpush1.msra.mxu0 %v1452
    %1581 = vmatprep.subr.mxu0 %v1455
    %1582 = vmatpush1.msra.mxu0 %v1454
    %1583 = vmatprep.subr.mxu0 %v1573
    %1584 = vmatpush1.msra.mxu0 %v1570
    %1585 = vmatprep.subr.mxu0 0.0
    %1586 = vmatpush1.msra.mxu0 0.0
    %1587 = vmatprep.subr.mxu0 0.0
    %1588 = vmatpush1.msra.mxu0 0.0
    %1589 = vmatprep.subr.mxu0 0.0
    %1590 = vmatpush1.msra.mxu0 0.0
    %1591 = vmatprep.subr.mxu0 0.0
    %1592 = vmatpush1.msra.mxu0 0.0
    %1593 = vmatprep.subr.mxu0 0.0
    %1594 = vmatpush1.msra.mxu0 0.0
    %1595 = vmatprep.subr.mxu0 0.0
    %1596 = vmatpush1.msra.mxu0 0.0
    %1597 = vmatprep.subr.mxu0 0.0
    %1598 = vmatpush1.msra.mxu0 0.0
    %1599 = vmatprep.subr.mxu0 0.0
    %1600 = vmatpush1.msra.mxu0 0.0
    %1601 = vmatprep.subr.mxu0 0.0
    %1602 = vmatpush1.msra.mxu0 0.0
    %1603 = vmatprep.subr.mxu0 0.0
    %1604 = vmatpush1.msra.mxu0 0.0
    %1605 = vmatprep.subr.mxu0 0.0
    %1606 = vmatpush1.msra.mxu0 0.0
    %1607 = vmatprep.subr.mxu0 0.0
    %1608 = vmatpush1.msra.mxu0 0.0
    %1609 = vmatprep.subr.mxu0 0.0
    %1610 = vmatpush1.msra.mxu0 0.0
    %1611 = vmatprep.subr.mxu0 0.0
    %1612 = vmatpush1.msra.mxu0 0.0
    %1613 = vmatprep.subr.mxu0 0.0
    %1614 = vmatpush1.msra.mxu0 0.0
    %1615 = vmatprep.subr.mxu0 0.0
    %1616 = vmatpush1.msra.mxu0 0.0
    %1617 = vmatprep.subr.mxu0 0.0
    %1618 = vmatpush1.msra.mxu0 0.0
    %1619 = vmatprep.subr.mxu0 0.0
    %1620 = vmatpush1.msra.mxu0 0.0
    %1621 = vmatprep.subr.mxu0 0.0
    %1622 = vmatpush1.msra.mxu0 0.0
    %1623 = vmatprep.subr.mxu0 0.0
    %1624 = vmatpush1.msra.mxu0 0.0
    %1625 = vmatprep.subr.mxu0 0.0
    %1626 = vmatpush1.msra.mxu0 0.0
    %1627 = vmatprep.subr.mxu0 0.0
    %1628 = vmatpush1.msra.mxu0 0.0
    %1629 = vmatprep.subr.mxu0 0.0
    %1630 = vmatpush1.msra.mxu0 0.0
    %1631 = vmatprep.subr.mxu0 0.0
    %1632 = vmatpush1.msra.mxu0 0.0
    %1633 = vmatprep.subr.mxu0 0.0
    %1634 = vmatpush1.msra.mxu0 0.0
    %1635 = vmatprep.subr.mxu0 0.0
    %1636 = vmatpush1.msra.mxu0 0.0
    %1637 = vmatprep.subr.mxu0 0.0
    %1638 = vmatpush1.msra.mxu0 0.0
    %1639 = vmatprep.mubr.f32.mxu0 0.0
    %1640 = vmatmul.mubr.f32.gmra.mrb[0].mxu0 %v84
    %v1641 = vpop.f32.mrb[0].mxu0
    %v1642 = vadd.f32 %v1541, %v1641
    %v1643 = vpop.f32.mrb[0].mxu0
    %v1644 = vadd.f32 %v1543, %v1643
    %1645 = vmatprep.mubr.f32.mxu0 0.0
    %1646 = vmatmul.mubr.f32.gmra.mrb[0].mxu0 %v87
    %v1647 = vpop.f32.mrb[0].mxu0
    %v1648 = vadd.f32 %v1547, %v1647
    %v1649 = vpop.f32.mrb[0].mxu0
    %v1650 = vadd.f32 %v1549, %v1649
    %1651 = vmatprep.mubr.f32.mxu0 0.0
    %1652 = vmatmul.mubr.f32.gmra.mrb[0].mxu0 %v90
    %v1653 = vpop.f32.mrb[0].mxu0
    %v1654 = vadd.f32 %v1553, %v1653
    %v1655 = vpop.f32.mrb[0].mxu0
    %v1656 = vadd.f32 %v1555, %v1655
    %1657 = vmatprep.mubr.f32.mxu0 0.0
    %1658 = vmatmul.mubr.f32.gmra.mrb[0].mxu0 %v93
    %v1659 = vpop.f32.mrb[0].mxu0
    %v1660 = vadd.f32 %v1559, %v1659
    %v1661 = vpop.f32.mrb[0].mxu0
    %v1662 = vadd.f32 %v1561, %v1661
    %1663 = vmatprep.mubr.f32.mxu0 0.0
    %1664 = vmatmul.mubr.f32.gmra.mrb[0].mxu0 %v96
    %v1665 = vpop.f32.mrb[0].mxu0
    %v1666 = vadd.f32 %v1565, %v1665
    %v1667 = vpop.f32.mrb[0].mxu0
    %v1668 = vadd.f32 %v1567, %v1667
    %1669 = vdwg.mxu0
    %1670 = vmatprep.subr.mxu0 %v1459
    %1671 = vmatpush1.msra.mxu0 %v1458
    %1672 = vmatprep.subr.mxu0 %v1461
    %1673 = vmatpush1.msra.mxu0 %v1460
    %1674 = vmatprep.subr.mxu0 %v1463
    %1675 = vmatpush1.msra.mxu0 %v1462
    %1676 = vmatprep.subr.mxu0 %v1465
    %1677 = vmatpush1.msra.mxu0 %v1464
    %1678 = vmatprep.subr.mxu0 %v1472
    %1679 = vmatpush1.msra.mxu0 %v1469
    %1680 = vmatprep.subr.mxu0 0.0
    %1681 = vmatpush1.msra.mxu0 0.0
    %1682 = vmatprep.subr.mxu0 0.0
    %1683 = vmatpush1.msra.mxu0 0.0
    %1684 = vmatprep.subr.mxu0 0.0
    %1685 = vmatpush1.msra.mxu0 0.0
    %1686 = vmatprep.subr.mxu0 0.0
    %1687 = vmatpush1.msra.mxu0 0.0
    %1688 = vmatprep.subr.mxu0 0.0
    %1689 = vmatpush1.msra.mxu0 0.0
    %1690 = vmatprep.subr.mxu0 0.0
    %1691 = vmatpush1.msra.mxu0 0.0
    %1692 = vmatprep.subr.mxu0 0.0
    %1693 = vmatpush1.msra.mxu0 0.0
    %1694 = vmatprep.subr.mxu0 0.0
    %1695 = vmatpush1.msra.mxu0 0.0
    %1696 = vmatprep.subr.mxu0 0.0
    %1697 = vmatpush1.msra.mxu0 0.0
    %1698 = vmatprep.subr.mxu0 0.0
    %1699 = vmatpush1.msra.mxu0 0.0
    %1700 = vmatprep.subr.mxu0 0.0
    %1701 = vmatpush1.msra.mxu0 0.0
    %1702 = vmatprep.subr.mxu0 0.0
    %1703 = vmatpush1.msra.mxu0 0.0
    %1704 = vmatprep.subr.mxu0 0.0
    %1705 = vmatpush1.msra.mxu0 0.0
    %1706 = vmatprep.subr.mxu0 0.0
    %1707 = vmatpush1.msra.mxu0 0.0
    %1708 = vmatprep.subr.mxu0 0.0
    %1709 = vmatpush1.msra.mxu0 0.0
    %1710 = vmatprep.subr.mxu0 0.0
    %1711 = vmatpush1.msra.mxu0 0.0
    %1712 = vmatprep.subr.mxu0 0.0
    %1713 = vmatpush1.msra.mxu0 0.0
    %1714 = vmatprep.subr.mxu0 0.0
    %1715 = vmatpush1.msra.mxu0 0.0
    %1716 = vmatprep.subr.mxu0 0.0
    %1717 = vmatpush1.msra.mxu0 0.0
    %1718 = vmatprep.subr.mxu0 0.0
    %1719 = vmatpush1.msra.mxu0 0.0
    %1720 = vmatprep.subr.mxu0 0.0
    %1721 = vmatpush1.msra.mxu0 0.0
    %1722 = vmatprep.subr.mxu0 0.0
    %1723 = vmatpush1.msra.mxu0 0.0
    %1724 = vmatprep.subr.mxu0 0.0
    %1725 = vmatpush1.msra.mxu0 0.0
    %1726 = vmatprep.subr.mxu0 0.0
    %1727 = vmatpush1.msra.mxu0 0.0
    %1728 = vmatprep.subr.mxu0 0.0
    %1729 = vmatpush1.msra.mxu0 0.0
    %1730 = vmatprep.subr.mxu0 0.0
    %1731 = vmatpush1.msra.mxu0 0.0
    %1732 = vmatprep.subr.mxu0 0.0
    %1733 = vmatpush1.msra.mxu0 0.0
    %1734 = vmatprep.mubr.f32.mxu0 0.0
    %1735 = vmatmul.mubr.f32.gmra.mrb[0].mxu0 %v84
    %v1736 = vpop.f32.mrb[0].mxu0
    %v1737 = vadd.f32 0.0, %v1736
    %v1738 = vpop.f32.mrb[0].mxu0
    %v1739 = vadd.f32 0.0, %v1738
    %1740 = vmatprep.mubr.f32.mxu0 0.0
    %1741 = vmatmul.mubr.f32.gmra.mrb[0].mxu0 %v87
    %v1742 = vpop.f32.mrb[0].mxu0
    %v1743 = vadd.f32 0.0, %v1742
    %v1744 = vpop.f32.mrb[0].mxu0
    %v1745 = vadd.f32 0.0, %v1744
    %1746 = vmatprep.mubr.f32.mxu0 0.0
    %1747 = vmatmul.mubr.f32.gmra.mrb[0].mxu0 %v90
    %v1748 = vpop.f32.mrb[0].mxu0
    %v1749 = vadd.f32 0.0, %v1748
    %v1750 = vpop.f32.mrb[0].mxu0
    %v1751 = vadd.f32 0.0, %v1750
    %1752 = vmatprep.mubr.f32.mxu0 0.0
    %1753 = vmatmul.mubr.f32.gmra.mrb[0].mxu0 %v93
    %v1754 = vpop.f32.mrb[0].mxu0
    %v1755 = vadd.f32 0.0, %v1754
    %v1756 = vpop.f32.mrb[0].mxu0
    %v1757 = vadd.f32 0.0, %v1756
    %1758 = vmatprep.mubr.f32.mxu0 0.0
    %1759 = vmatmul.mubr.f32.gmra.mrb[0].mxu0 %v96
    %v1760 = vpop.f32.mrb[0].mxu0
    %v1761 = vadd.f32 0.0, %v1760
    %v1762 = vpop.f32.mrb[0].mxu0
    %v1763 = vadd.f32 0.0, %v1762
    %1764 = vdwg.mxu0
    %1765 = vmatprep.subr.mxu0 %v1449
    %1766 = vmatpush1.msra.mxu0 %v1448
    %1767 = vmatprep.subr.mxu0 %v1451
    %1768 = vmatpush1.msra.mxu0 %v1450
    %1769 = vmatprep.subr.mxu0 %v1453
    %1770 = vmatpush1.msra.mxu0 %v1452
    %1771 = vmatprep.subr.mxu0 %v1455
    %1772 = vmatpush1.msra.mxu0 %v1454
    %1773 = vmatprep.subr.mxu0 %v1573
    %1774 = vmatpush1.msra.mxu0 %v1570
    %1775 = vmatprep.subr.mxu0 0.0
    %1776 = vmatpush1.msra.mxu0 0.0
    %1777 = vmatprep.subr.mxu0 0.0
    %1778 = vmatpush1.msra.mxu0 0.0
    %1779 = vmatprep.subr.mxu0 0.0
    %1780 = vmatpush1.msra.mxu0 0.0
    %1781 = vmatprep.subr.mxu0 0.0
    %1782 = vmatpush1.msra.mxu0 0.0
    %1783 = vmatprep.subr.mxu0 0.0
    %1784 = vmatpush1.msra.mxu0 0.0
    %1785 = vmatprep.subr.mxu0 0.0
    %1786 = vmatpush1.msra.mxu0 0.0
    %1787 = vmatprep.subr.mxu0 0.0
    %1788 = vmatpush1.msra.mxu0 0.0
    %1789 = vmatprep.subr.mxu0 0.0
    %1790 = vmatpush1.msra.mxu0 0.0
    %1791 = vmatprep.subr.mxu0 0.0
    %1792 = vmatpush1.msra.mxu0 0.0
    %1793 = vmatprep.subr.mxu0 0.0
    %1794 = vmatpush1.msra.mxu0 0.0
    %1795 = vmatprep.subr.mxu0 0.0
    %1796 = vmatpush1.msra.mxu0 0.0
    %1797 = vmatprep.subr.mxu0 0.0
    %1798 = vmatpush1.msra.mxu0 0.0
    %1799 = vmatprep.subr.mxu0 0.0
    %1800 = vmatpush1.msra.mxu0 0.0
    %1801 = vmatprep.subr.mxu0 0.0
    %1802 = vmatpush1.msra.mxu0 0.0
    %1803 = vmatprep.subr.mxu0 0.0
    %1804 = vmatpush1.msra.mxu0 0.0
    %1805 = vmatprep.subr.mxu0 0.0
    %1806 = vmatpush1.msra.mxu0 0.0
    %1807 = vmatprep.subr.mxu0 0.0
    %1808 = vmatpush1.msra.mxu0 0.0
    %1809 = vmatprep.subr.mxu0 0.0
    %1810 = vmatpush1.msra.mxu0 0.0
    %1811 = vmatprep.subr.mxu0 0.0
    %1812 = vmatpush1.msra.mxu0 0.0
    %1813 = vmatprep.subr.mxu0 0.0
    %1814 = vmatpush1.msra.mxu0 0.0
    %1815 = vmatprep.subr.mxu0 0.0
    %1816 = vmatpush1.msra.mxu0 0.0
    %1817 = vmatprep.subr.mxu0 0.0
    %1818 = vmatpush1.msra.mxu0 0.0
    %1819 = vmatprep.subr.mxu0 0.0
    %1820 = vmatpush1.msra.mxu0 0.0
    %1821 = vmatprep.subr.mxu0 0.0
    %1822 = vmatpush1.msra.mxu0 0.0
    %1823 = vmatprep.subr.mxu0 0.0
    %1824 = vmatpush1.msra.mxu0 0.0
    %1825 = vmatprep.subr.mxu0 0.0
    %1826 = vmatpush1.msra.mxu0 0.0
    %1827 = vmatprep.subr.mxu0 0.0
    %1828 = vmatpush1.msra.mxu0 0.0
    %1829 = vmatprep.mubr.f32.mxu0 0.0
    %1830 = vmatmul.mubr.f32.gmra.mrb[0].mxu0 %v294
    %v1831 = vpop.f32.mrb[0].mxu0
    %v1832 = vadd.f32 0.0, %v1831
    %v1833 = vpop.f32.mrb[0].mxu0
    %v1834 = vadd.f32 0.0, %v1833
    %1835 = vmatprep.mubr.f32.mxu0 0.0
    %1836 = vmatmul.mubr.f32.gmra.mrb[0].mxu0 %v297
    %v1837 = vpop.f32.mrb[0].mxu0
    %v1838 = vadd.f32 0.0, %v1837
    %v1839 = vpop.f32.mrb[0].mxu0
    %v1840 = vadd.f32 0.0, %v1839
    %1841 = vmatprep.mubr.f32.mxu0 0.0
    %1842 = vmatmul.mubr.f32.gmra.mrb[0].mxu0 %v300
    %v1843 = vpop.f32.mrb[0].mxu0
    %v1844 = vadd.f32 0.0, %v1843
    %v1845 = vpop.f32.mrb[0].mxu0
    %v1846 = vadd.f32 0.0, %v1845
    %1847 = vmatprep.mubr.f32.mxu0 0.0
    %1848 = vmatmul.mubr.f32.gmra.mrb[0].mxu0 %v303
    %v1849 = vpop.f32.mrb[0].mxu0
    %v1850 = vadd.f32 0.0, %v1849
    %v1851 = vpop.f32.mrb[0].mxu0
    %v1852 = vadd.f32 0.0, %v1851
    %1853 = vmatprep.mubr.f32.mxu0 0.0
    %1854 = vmatmul.mubr.f32.gmra.mrb[0].mxu0 %v306
    %v1855 = vpop.f32.mrb[0].mxu0
    %v1856 = vadd.f32 0.0, %v1855
    %v1857 = vpop.f32.mrb[0].mxu0
    %v1858 = vadd.f32 0.0, %v1857
    %1859 = vdwg.mxu0
    %v1860 = vsub.f32 %v1737, %v1832
    %v1861 = vsub.f32 %v1739, %v1834
    %v1862 = vsub.f32 %v1743, %v1838
    %v1863 = vsub.f32 %v1745, %v1840
    %v1864 = vsub.f32 %v1749, %v1844
    %v1865 = vsub.f32 %v1751, %v1846
    %v1866 = vsub.f32 %v1755, %v1850
    %v1867 = vsub.f32 %v1757, %v1852
    %v1868 = vsub.f32 %v1761, %v1856
    %v1869 = vsub.f32 %v1763, %v1858
    %v1870 = vld [vmem:[#allocation4] sm:$0xff]
    %v1871 = vld [vmem:[#allocation4 + $0x8] sm:$0xff]
    %v1872 = vld [vmem:[#allocation4 + $0x10] sm:$0xff]
    %v1873 = vld [vmem:[#allocation4 + $0x18] sm:$0xff]
    %v1874 = vld [vmem:[#allocation4 + $0x20] sm:$0xff]
    %v1875 = vld [vmem:[#allocation4 + $0x28] sm:$0xff]
    %v1876 = vld [vmem:[#allocation4 + $0x30] sm:$0xff]
    %v1877 = vld [vmem:[#allocation4 + $0x38] sm:$0xff]
    %v1878 = vld [vmem:[#allocation4 + $0x40] sm:$0xff]
    %v1879 = vld [vmem:[#allocation4 + $0x48] sm:$0xff]
    %v1880 = vld [vmem:[#allocation4 + $0x50] sm:$0xff]
    %v1881 = vld [vmem:[#allocation4 + $0x58] sm:$0xff]
    %v1882 = vld [vmem:[#allocation4 + $0x60] sm:$0xff]
    %v1883 = vld [vmem:[#allocation4 + $0x68] sm:$0xff]
    %v1884 = vld [vmem:[#allocation4 + $0x70] sm:$0xff]
    %v1885 = vld [vmem:[#allocation4 + $0x78] sm:$0xff]
    %v1886 = vld [vmem:[#allocation4 + $0x80] sm:$0xff]
    %v1887 = vld [vmem:[#allocation4 + $0x88] sm:$0xff]
    %v1888 = vld [vmem:[#allocation4 + $0x90] sm:$0xff]
    %v1889 = vld [vmem:[#allocation4 + $0x98] sm:$0xff]
    %v1890 = vld [vmem:[#allocation4 + $0xa0] sm:$0xff]
    %v1891 = vld [vmem:[#allocation4 + $0xa8] sm:$0xff]
    %v1892 = vld [vmem:[#allocation4 + $0xb0] sm:$0xff]
    %v1893 = vld [vmem:[#allocation4 + $0xb8] sm:$0xff]
    %v1894 = vld [vmem:[#allocation4 + $0xc0] sm:$0xff]
    %v1895 = vld [vmem:[#allocation4 + $0xc8] sm:$0xff]
    %v1896 = vld [vmem:[#allocation4 + $0xd0] sm:$0xff]
    %v1897 = vld [vmem:[#allocation4 + $0xd8] sm:$0xff]
    %v1898 = vld [vmem:[#allocation4 + $0xe0] sm:$0xff]
    %v1899 = vld [vmem:[#allocation4 + $0xe8] sm:$0xff]
    %v1900 = vld [vmem:[#allocation4 + $0xf0] sm:$0xff]
    %v1901 = vld [vmem:[#allocation4 + $0xf8] sm:$0xff]
    %v1902 = vld [vmem:[#allocation4 + $0x100] sm:$0xff]
    %v1903 = vld [vmem:[#allocation4 + $0x108] sm:$0xff]
    %v1904 = vld [vmem:[#allocation4 + $0x110] sm:$0xff]
    %v1905 = vld [vmem:[#allocation4 + $0x118] sm:$0xff]
    %v1906 = vld [vmem:[#allocation4 + $0x120] sm:$0xff]
    %v1907 = vld [vmem:[#allocation4 + $0x128] sm:$0xff]
    %v1908 = vld [vmem:[#allocation4 + $0x130] sm:$0xff]
    %v1909 = vld [vmem:[#allocation4 + $0x138] sm:$0xff]
    %v1910 = vld [vmem:[#allocation4 + $0x140] sm:$0xff]
    %v1911 = vld [vmem:[#allocation4 + $0x148] sm:$0xff]
    %v1912 = vld [vmem:[#allocation4 + $0x150] sm:$0xff]
    %v1913 = vld [vmem:[#allocation4 + $0x158] sm:$0xff]
    %v1914 = vld [vmem:[#allocation4 + $0x160] sm:$0xff]
    %v1915 = vld [vmem:[#allocation4 + $0x168] sm:$0xff]
    %v1916 = vld [vmem:[#allocation4 + $0x170] sm:$0xff]
    %v1917 = vld [vmem:[#allocation4 + $0x178] sm:$0xff]
    %v1918 = vld [vmem:[#allocation4 + $0x180] sm:$0xff]
    %v1919 = vld [vmem:[#allocation4 + $0x188] sm:$0xff]
    %v1920 = vld [vmem:[#allocation4 + $0x190] sm:$0xff]
    %v1921 = vld [vmem:[#allocation4 + $0x198] sm:$0xff]
    %v1922 = vld [vmem:[#allocation4 + $0x1a0] sm:$0xff]
    %v1923 = vld [vmem:[#allocation4 + $0x1a8] sm:$0xff]
    %v1924 = vld [vmem:[#allocation4 + $0x1b0] sm:$0xff]
    %v1925 = vld [vmem:[#allocation4 + $0x1b8] sm:$0xff]
    %v1926 = vld [vmem:[#allocation4 + $0x1c0] sm:$0xff]
    %v1927 = vld [vmem:[%s7] sm:$0xff]
    %v1928 = vld [vmem:[%s7 + $0x8] sm:$0xff]
    %v1929 = vld [vmem:[%s7 + $0x10] sm:$0xff]
    %v1930 = vld [vmem:[%s7 + $0x18] sm:$0xff]
    %v1931 = vld [vmem:[%s7 + $0x20] sm:$0xff]
    %v1932 = vld [vmem:[%s7 + $0x28] sm:$0xff]
    %v1933 = vld [vmem:[%s7 + $0x30] sm:$0xff]
    %v1934 = vld [vmem:[%s7 + $0x38] sm:$0xff]
    %v1935 = vld [vmem:[%s7 + $0x40] sm:$0xff]
    %v1936 = vld [vmem:[%s7 + $0x48] sm:$0xff]
    %v1937 = vld [vmem:[%s7 + $0x50] sm:$0xff]
    %v1938 = vld [vmem:[%s7 + $0x58] sm:$0xff]
    %v1939 = vld [vmem:[%s7 + $0x60] sm:$0xff]
    %v1940 = vld [vmem:[%s7 + $0x68] sm:$0xff]
    %v1941 = vld [vmem:[%s7 + $0x70] sm:$0xff]
    %v1942 = vld [vmem:[%s7 + $0x78] sm:$0xff]
    %v1943 = vld [vmem:[%s7 + $0x80] sm:$0xff]
    %v1944 = vld [vmem:[%s7 + $0x88] sm:$0xff]
    %v1945 = vld [vmem:[%s7 + $0x90] sm:$0xff]
    %v1946 = vld [vmem:[%s7 + $0x98] sm:$0xff]
    %v1947 = vld [vmem:[%s7 + $0xa0] sm:$0xff]
    %v1948 = vld [vmem:[%s7 + $0xa8] sm:$0xff]
    %v1949 = vld [vmem:[%s7 + $0xb0] sm:$0xff]
    %v1950 = vld [vmem:[%s7 + $0xb8] sm:$0xff]
    %v1951 = vld [vmem:[%s7 + $0xc0] sm:$0xff]
    %v1952 = vld [vmem:[%s7 + $0xc8] sm:$0xff]
    %v1953 = vld [vmem:[%s7 + $0xd0] sm:$0xff]
    %v1954 = vld [vmem:[%s7 + $0xd8] sm:$0xff]
    %v1955 = vld [vmem:[%s7 + $0xe0] sm:$0xff]
    %v1956 = vld [vmem:[%s7 + $0xe8] sm:$0xff]
    %v1957 = vld [vmem:[%s7 + $0xf0] sm:$0xff]
    %v1958 = vld [vmem:[%s7 + $0xf8] sm:$0xff]
    %v1959 = vld [vmem:[%s7 + $0x100] sm:$0xff]
    %v1960 = vld [vmem:[%s7 + $0x108] sm:$0xff]
    %v1961 = vld [vmem:[%s7 + $0x110] sm:$0xff]
    %v1962 = vld [vmem:[%s7 + $0x118] sm:$0xff]
    %v1963 = vld [vmem:[%s7 + $0x120] sm:$0xff]
    %v1964 = vld [vmem:[%s7 + $0x128] sm:$0xff]
    %v1965 = vld [vmem:[%s7 + $0x130] sm:$0xff]
    %v1966 = vld [vmem:[%s7 + $0x138] sm:$0xff]
    %v1967 = vld [vmem:[%s7 + $0x140] sm:$0xff]
    %v1968 = vld [vmem:[%s7 + $0x148] sm:$0xff]
    %v1969 = vld [vmem:[%s7 + $0x150] sm:$0xff]
    %v1970 = vld [vmem:[%s7 + $0x158] sm:$0xff]
    %v1971 = vld [vmem:[%s7 + $0x160] sm:$0xff]
    %v1972 = vld [vmem:[%s7 + $0x168] sm:$0xff]
    %v1973 = vld [vmem:[%s7 + $0x170] sm:$0xff]
    %v1974 = vld [vmem:[%s7 + $0x178] sm:$0xff]
    %v1975 = vld [vmem:[%s7 + $0x180] sm:$0xff]
    %v1976 = vld [vmem:[%s7 + $0x188] sm:$0xff]
    %v1977 = vld [vmem:[%s7 + $0x190] sm:$0xff]
    %v1978 = vld [vmem:[%s7 + $0x198] sm:$0xff]
    %v1979 = vld [vmem:[%s7 + $0x1a0] sm:$0xff]
    %v1980 = vld [vmem:[%s7 + $0x1a8] sm:$0xff]
    %v1981 = vld [vmem:[%s7 + $0x1b0] sm:$0xff]
    %v1982 = vld [vmem:[%s7 + $0x1b8] sm:$0xff]
    %v1983 = vld [vmem:[%s7 + $0x1c0] sm:$0xff]
    %vm1984 = vcmask 195584
    %v1986 = vsel %vm1984, %v1861, 0
    %v1989 = vsel %vm1984, %v1863, 0
    %v1992 = vsel %vm1984, %v1865, 0
    %v1995 = vsel %vm1984, %v1867, 0
    %v1998 = vsel %vm1984, %v1869, 0
    %2000 = vmatprep.subr.mxu0 %v1928
    %2001 = vmatpush1.msra.mxu0 %v1927
    %2002 = vmatprep.subr.mxu0 %v1931
    %2003 = vmatpush1.msra.mxu0 %v1930
    %2004 = vmatprep.subr.mxu0 %v1934
    %2005 = vmatpush1.msra.mxu0 %v1933
    %2006 = vmatprep.subr.mxu0 %v1937
    %2007 = vmatpush1.msra.mxu0 %v1936
    %2008 = vmatprep.subr.mxu0 %v1940
    %2009 = vmatpush1.msra.mxu0 %v1939
    %2010 = vmatprep.subr.mxu0 %v1943
    %2011 = vmatpush1.msra.mxu0 %v1942
    %2012 = vmatprep.subr.mxu0 %v1946
    %2013 = vmatpush1.msra.mxu0 %v1945
    %2014 = vmatprep.subr.mxu0 %v1949
    %2015 = vmatpush1.msra.mxu0 %v1948
    %2016 = vmatprep.subr.mxu0 %v1952
    %2017 = vmatpush1.msra.mxu0 %v1951
    %2018 = vmatprep.subr.mxu0 %v1955
    %2019 = vmatpush1.msra.mxu0 %v1954
    %2020 = vmatprep.subr.mxu0 %v1958
    %2021 = vmatpush1.msra.mxu0 %v1957
    %2022 = vmatprep.subr.mxu0 %v1961
    %2023 = vmatpush1.msra.mxu0 %v1960
    %2024 = vmatprep.subr.mxu0 %v1964
    %2025 = vmatpush1.msra.mxu0 %v1963
    %2026 = vmatprep.subr.mxu0 %v1967
    %2027 = vmatpush1.msra.mxu0 %v1966
    %2028 = vmatprep.subr.mxu0 %v1970
    %2029 = vmatpush1.msra.mxu0 %v1969
    %2030 = vmatprep.subr.mxu0 %v1973
    %2031 = vmatpush1.msra.mxu0 %v1972
    %2032 = vmatprep.subr.mxu0 %v1976
    %2033 = vmatpush1.msra.mxu0 %v1975
    %2034 = vmatprep.subr.mxu0 %v1979
    %2035 = vmatpush1.msra.mxu0 %v1978
    %2036 = vmatprep.subr.mxu0 %v1982
    %2037 = vmatpush1.msra.mxu0 %v1981
    %2038 = vmatprep.subr.mxu0 0.0
    %2039 = vmatpush1.msra.mxu0 0.0
    %2040 = vmatprep.subr.mxu0 0.0
    %2041 = vmatpush1.msra.mxu0 0.0
    %2042 = vmatprep.subr.mxu0 0.0
    %2043 = vmatpush1.msra.mxu0 0.0
    %2044 = vmatprep.subr.mxu0 0.0
    %2045 = vmatpush1.msra.mxu0 0.0
    %2046 = vmatprep.subr.mxu0 0.0
    %2047 = vmatpush1.msra.mxu0 0.0
    %2048 = vmatprep.subr.mxu0 0.0
    %2049 = vmatpush1.msra.mxu0 0.0
    %2050 = vmatprep.subr.mxu0 0.0
    %2051 = vmatpush1.msra.mxu0 0.0
    %2052 = vmatprep.subr.mxu0 0.0
    %2053 = vmatpush1.msra.mxu0 0.0
    %2054 = vmatprep.subr.mxu0 0.0
    %2055 = vmatpush1.msra.mxu0 0.0
    %2056 = vmatprep.subr.mxu0 0.0
    %2057 = vmatpush1.msra.mxu0 0.0
    %2058 = vmatprep.subr.mxu0 0.0
    %2059 = vmatpush1.msra.mxu0 0.0
    %2060 = vmatprep.subr.mxu0 0.0
    %2061 = vmatpush1.msra.mxu0 0.0
    %2062 = vmatprep.subr.mxu0 0.0
    %2063 = vmatpush1.msra.mxu0 0.0
    %2064 = vmatprep.mubr.f32.mxu0 %v1986
    %2065 = vmatmul.mubr.f32.gmra.mrb[0].mxu0 %v1860
    %v2066 = vpop.f32.mrb[0].mxu0
    %v2067 = vadd.f32 0.0, %v2066
    %v2068 = vpop.f32.mrb[0].mxu0
    %v2069 = vadd.f32 0.0, %v2068
    %2070 = vmatprep.mubr.f32.mxu0 %v1989
    %2071 = vmatmul.mubr.f32.gmra.mrb[0].mxu0 %v1862
    %v2072 = vpop.f32.mrb[0].mxu0
    %v2073 = vadd.f32 0.0, %v2072
    %v2074 = vpop.f32.mrb[0].mxu0
    %v2075 = vadd.f32 0.0, %v2074
    %2076 = vmatprep.mubr.f32.mxu0 %v1992
    %2077 = vmatmul.mubr.f32.gmra.mrb[0].mxu0 %v1864
    %v2078 = vpop.f32.mrb[0].mxu0
    %v2079 = vadd.f32 0.0, %v2078
    %v2080 = vpop.f32.mrb[0].mxu0
    %v2081 = vadd.f32 0.0, %v2080
    %2082 = vmatprep.mubr.f32.mxu0 %v1995
    %2083 = vmatmul.mubr.f32.gmra.mrb[0].mxu0 %v1866
    %v2084 = vpop.f32.mrb[0].mxu0
    %v2085 = vadd.f32 0.0, %v2084
    %v2086 = vpop.f32.mrb[0].mxu0
    %v2087 = vadd.f32 0.0, %v2086
    %2088 = vmatprep.mubr.f32.mxu0 %v1998
    %2089 = vmatmul.mubr.f32.gmra.mrb[0].mxu0 %v1868
    %v2090 = vpop.f32.mrb[0].mxu0
    %v2091 = vadd.f32 0.0, %v2090
    %v2092 = vpop.f32.mrb[0].mxu0
    %v2093 = vadd.f32 0.0, %v2092
    %2094 = vdwg.mxu0
    %2095 = vmatprep.subr.mxu0 0.0
    %2096 = vmatpush1.msra.mxu0 %v1929
    %2097 = vmatprep.subr.mxu0 0.0
    %2098 = vmatpush1.msra.mxu0 %v1932
    %2099 = vmatprep.subr.mxu0 0.0
    %2100 = vmatpush1.msra.mxu0 %v1935
    %2101 = vmatprep.subr.mxu0 0.0
    %2102 = vmatpush1.msra.mxu0 %v1938
    %2103 = vmatprep.subr.mxu0 0.0
    %2104 = vmatpush1.msra.mxu0 %v1941
    %2105 = vmatprep.subr.mxu0 0.0
    %2106 = vmatpush1.msra.mxu0 %v1944
    %2107 = vmatprep.subr.mxu0 0.0
    %2108 = vmatpush1.msra.mxu0 %v1947
    %2109 = vmatprep.subr.mxu0 0.0
    %2110 = vmatpush1.msra.mxu0 %v1950
    %2111 = vmatprep.subr.mxu0 0.0
    %2112 = vmatpush1.msra.mxu0 %v1953
    %2113 = vmatprep.subr.mxu0 0.0
    %2114 = vmatpush1.msra.mxu0 %v1956
    %2115 = vmatprep.subr.mxu0 0.0
    %2116 = vmatpush1.msra.mxu0 %v1959
    %2117 = vmatprep.subr.mxu0 0.0
    %2118 = vmatpush1.msra.mxu0 %v1962
    %2119 = vmatprep.subr.mxu0 0.0
    %2120 = vmatpush1.msra.mxu0 %v1965
    %2121 = vmatprep.subr.mxu0 0.0
    %2122 = vmatpush1.msra.mxu0 %v1968
    %2123 = vmatprep.subr.mxu0 0.0
    %2124 = vmatpush1.msra.mxu0 %v1971
    %2125 = vmatprep.subr.mxu0 0.0
    %2126 = vmatpush1.msra.mxu0 %v1974
    %2127 = vmatprep.subr.mxu0 0.0
    %2128 = vmatpush1.msra.mxu0 %v1977
    %2129 = vmatprep.subr.mxu0 0.0
    %2130 = vmatpush1.msra.mxu0 %v1980
    %2131 = vmatprep.subr.mxu0 0.0
    %2132 = vmatpush1.msra.mxu0 %v1983
    %2133 = vmatprep.subr.mxu0 0.0
    %2134 = vmatpush1.msra.mxu0 0.0
    %2135 = vmatprep.subr.mxu0 0.0
    %2136 = vmatpush1.msra.mxu0 0.0
    %2137 = vmatprep.subr.mxu0 0.0
    %2138 = vmatpush1.msra.mxu0 0.0
    %2139 = vmatprep.subr.mxu0 0.0
    %2140 = vmatpush1.msra.mxu0 0.0
    %2141 = vmatprep.subr.mxu0 0.0
    %2142 = vmatpush1.msra.mxu0 0.0
    %2143 = vmatprep.subr.mxu0 0.0
    %2144 = vmatpush1.msra.mxu0 0.0
    %2145 = vmatprep.subr.mxu0 0.0
    %2146 = vmatpush1.msra.mxu0 0.0
    %2147 = vmatprep.subr.mxu0 0.0
    %2148 = vmatpush1.msra.mxu0 0.0
    %2149 = vmatprep.subr.mxu0 0.0
    %2150 = vmatpush1.msra.mxu0 0.0
    %2151 = vmatprep.subr.mxu0 0.0
    %2152 = vmatpush1.msra.mxu0 0.0
    %2153 = vmatprep.subr.mxu0 0.0
    %2154 = vmatpush1.msra.mxu0 0.0
    %2155 = vmatprep.subr.mxu0 0.0
    %2156 = vmatpush1.msra.mxu0 0.0
    %2157 = vmatprep.subr.mxu0 0.0
    %2158 = vmatpush1.msra.mxu0 0.0
    %2159 = vmatprep.mubr.f32.mxu0 %v1986
    %2160 = vmatmul.mubr.f32.gmra.mrb[0].mxu0 %v1860
    %v2161 = vpop.f32.mrb[0].mxu0
    %v2162 = vadd.f32 0.0, %v2161
    %v2163 = vpop.f32.mrb[0].mxu0
    %2164 = vmatprep.mubr.f32.mxu0 %v1989
    %2165 = vmatmul.mubr.f32.gmra.mrb[0].mxu0 %v1862
    %v2166 = vpop.f32.mrb[0].mxu0
    %v2167 = vadd.f32 0.0, %v2166
    %v2168 = vpop.f32.mrb[0].mxu0
    %2169 = vmatprep.mubr.f32.mxu0 %v1992
    %2170 = vmatmul.mubr.f32.gmra.mrb[0].mxu0 %v1864
    %v2171 = vpop.f32.mrb[0].mxu0
    %v2172 = vadd.f32 0.0, %v2171
    %v2173 = vpop.f32.mrb[0].mxu0
    %2174 = vmatprep.mubr.f32.mxu0 %v1995
    %2175 = vmatmul.mubr.f32.gmra.mrb[0].mxu0 %v1866
    %v2176 = vpop.f32.mrb[0].mxu0
    %v2177 = vadd.f32 0.0, %v2176
    %v2178 = vpop.f32.mrb[0].mxu0
    %2179 = vmatprep.mubr.f32.mxu0 %v1998
    %2180 = vmatmul.mubr.f32.gmra.mrb[0].mxu0 %v1868
    %v2181 = vpop.f32.mrb[0].mxu0
    %v2182 = vadd.f32 0.0, %v2181
    %v2183 = vpop.f32.mrb[0].mxu0
    %2184 = vdwg.mxu0
    %v2186 = vsel %vm1984, %v1644, 0
    %v2189 = vsel %vm1984, %v1650, 0
    %v2192 = vsel %vm1984, %v1656, 0
    %v2195 = vsel %vm1984, %v1662, 0
    %v2198 = vsel %vm1984, %v1668, 0
    %2200 = vmatprep.subr.mxu0 %v1871
    %2201 = vmatpush1.msra.mxu0 %v1870
    %2202 = vmatprep.subr.mxu0 %v1874
    %2203 = vmatpush1.msra.mxu0 %v1873
    %2204 = vmatprep.subr.mxu0 %v1877
    %2205 = vmatpush1.msra.mxu0 %v1876
    %2206 = vmatprep.subr.mxu0 %v1880
    %2207 = vmatpush1.msra.mxu0 %v1879
    %2208 = vmatprep.subr.mxu0 %v1883
    %2209 = vmatpush1.msra.mxu0 %v1882
    %2210 = vmatprep.subr.mxu0 %v1886
    %2211 = vmatpush1.msra.mxu0 %v1885
    %2212 = vmatprep.subr.mxu0 %v1889
    %2213 = vmatpush1.msra.mxu0 %v1888
    %2214 = vmatprep.subr.mxu0 %v1892
    %2215 = vmatpush1.msra.mxu0 %v1891
    %2216 = vmatprep.subr.mxu0 %v1895
    %2217 = vmatpush1.msra.mxu0 %v1894
    %2218 = vmatprep.subr.mxu0 %v1898
    %2219 = vmatpush1.msra.mxu0 %v1897
    %2220 = vmatprep.subr.mxu0 %v1901
    %2221 = vmatpush1.msra.mxu0 %v1900
    %2222 = vmatprep.subr.mxu0 %v1904
    %2223 = vmatpush1.msra.mxu0 %v1903
    %2224 = vmatprep.subr.mxu0 %v1907
    %2225 = vmatpush1.msra.mxu0 %v1906
    %2226 = vmatprep.subr.mxu0 %v1910
    %2227 = vmatpush1.msra.mxu0 %v1909
    %2228 = vmatprep.subr.mxu0 %v1913
    %2229 = vmatpush1.msra.mxu0 %v1912
    %2230 = vmatprep.subr.mxu0 %v1916
    %2231 = vmatpush1.msra.mxu0 %v1915
    %2232 = vmatprep.subr.mxu0 %v1919
    %2233 = vmatpush1.msra.mxu0 %v1918
    %2234 = vmatprep.subr.mxu0 %v1922
    %2235 = vmatpush1.msra.mxu0 %v1921
    %2236 = vmatprep.subr.mxu0 %v1925
    %2237 = vmatpush1.msra.mxu0 %v1924
    %2238 = vmatprep.subr.mxu0 0.0
    %2239 = vmatpush1.msra.mxu0 0.0
    %2240 = vmatprep.subr.mxu0 0.0
    %2241 = vmatpush1.msra.mxu0 0.0
    %2242 = vmatprep.subr.mxu0 0.0
    %2243 = vmatpush1.msra.mxu0 0.0
    %2244 = vmatprep.subr.mxu0 0.0
    %2245 = vmatpush1.msra.mxu0 0.0
    %2246 = vmatprep.subr.mxu0 0.0
    %2247 = vmatpush1.msra.mxu0 0.0
    %2248 = vmatprep.subr.mxu0 0.0
    %2249 = vmatpush1.msra.mxu0 0.0
    %2250 = vmatprep.subr.mxu0 0.0
    %2251 = vmatpush1.msra.mxu0 0.0
    %2252 = vmatprep.subr.mxu0 0.0
    %2253 = vmatpush1.msra.mxu0 0.0
    %2254 = vmatprep.subr.mxu0 0.0
    %2255 = vmatpush1.msra.mxu0 0.0
    %2256 = vmatprep.subr.mxu0 0.0
    %2257 = vmatpush1.msra.mxu0 0.0
    %2258 = vmatprep.subr.mxu0 0.0
    %2259 = vmatpush1.msra.mxu0 0.0
    %2260 = vmatprep.subr.mxu0 0.0
    %2261 = vmatpush1.msra.mxu0 0.0
    %2262 = vmatprep.subr.mxu0 0.0
    %2263 = vmatpush1.msra.mxu0 0.0
    %2264 = vmatprep.mubr.f32.mxu0 %v2186
    %2265 = vmatmul.mubr.f32.gmra.mrb[0].mxu0 %v1642
    %v2266 = vpop.f32.mrb[0].mxu0
    %v2267 = vadd.f32 %v2067, %v2266
    %v2268 = vpop.f32.mrb[0].mxu0
    %v2269 = vadd.f32 %v2069, %v2268
    %2270 = vmatprep.mubr.f32.mxu0 %v2189
    %2271 = vmatmul.mubr.f32.gmra.mrb[0].mxu0 %v1648
    %v2272 = vpop.f32.mrb[0].mxu0
    %v2273 = vadd.f32 %v2073, %v2272
    %v2274 = vpop.f32.mrb[0].mxu0
    %v2275 = vadd.f32 %v2075, %v2274
    %2276 = vmatprep.mubr.f32.mxu0 %v2192
    %2277 = vmatmul.mubr.f32.gmra.mrb[0].mxu0 %v1654
    %v2278 = vpop.f32.mrb[0].mxu0
    %v2279 = vadd.f32 %v2079, %v2278
    %v2280 = vpop.f32.mrb[0].mxu0
    %v2281 = vadd.f32 %v2081, %v2280
    %2282 = vmatprep.mubr.f32.mxu0 %v2195
    %2283 = vmatmul.mubr.f32.gmra.mrb[0].mxu0 %v1660
    %v2284 = vpop.f32.mrb[0].mxu0
    %v2285 = vadd.f32 %v2085, %v2284
    %v2286 = vpop.f32.mrb[0].mxu0
    %v2287 = vadd.f32 %v2087, %v2286
    %2288 = vmatprep.mubr.f32.mxu0 %v2198
    %2289 = vmatmul.mubr.f32.gmra.mrb[0].mxu0 %v1666
    %v2290 = vpop.f32.mrb[0].mxu0
    %v2291 = vadd.f32 %v2091, %v2290
    %v2292 = vpop.f32.mrb[0].mxu0
    %v2293 = vadd.f32 %v2093, %v2292
    %2294 = vdwg.mxu0
    %2295 = vmatprep.subr.mxu0 0.0
    %2296 = vmatpush1.msra.mxu0 %v1872
    %2297 = vmatprep.subr.mxu0 0.0
    %2298 = vmatpush1.msra.mxu0 %v1875
    %2299 = vmatprep.subr.mxu0 0.0
    %2300 = vmatpush1.msra.mxu0 %v1878
    %2301 = vmatprep.subr.mxu0 0.0
    %2302 = vmatpush1.msra.mxu0 %v1881
    %2303 = vmatprep.subr.mxu0 0.0
    %2304 = vmatpush1.msra.mxu0 %v1884
    %2305 = vmatprep.subr.mxu0 0.0
    %2306 = vmatpush1.msra.mxu0 %v1887
    %2307 = vmatprep.subr.mxu0 0.0
    %2308 = vmatpush1.msra.mxu0 %v1890
    %2309 = vmatprep.subr.mxu0 0.0
    %2310 = vmatpush1.msra.mxu0 %v1893
    %2311 = vmatprep.subr.mxu0 0.0
    %2312 = vmatpush1.msra.mxu0 %v1896
    %2313 = vmatprep.subr.mxu0 0.0
    %2314 = vmatpush1.msra.mxu0 %v1899
    %2315 = vmatprep.subr.mxu0 0.0
    %2316 = vmatpush1.msra.mxu0 %v1902
    %2317 = vmatprep.subr.mxu0 0.0
    %2318 = vmatpush1.msra.mxu0 %v1905
    %2319 = vmatprep.subr.mxu0 0.0
    %2320 = vmatpush1.msra.mxu0 %v1908
    %2321 = vmatprep.subr.mxu0 0.0
    %2322 = vmatpush1.msra.mxu0 %v1911
    %2323 = vmatprep.subr.mxu0 0.0
    %2324 = vmatpush1.msra.mxu0 %v1914
    %2325 = vmatprep.subr.mxu0 0.0
    %2326 = vmatpush1.msra.mxu0 %v1917
    %2327 = vmatprep.subr.mxu0 0.0
    %2328 = vmatpush1.msra.mxu0 %v1920
    %2329 = vmatprep.subr.mxu0 0.0
    %2330 = vmatpush1.msra.mxu0 %v1923
    %2331 = vmatprep.subr.mxu0 0.0
    %2332 = vmatpush1.msra.mxu0 %v1926
    %2333 = vmatprep.subr.mxu0 0.0
    %2334 = vmatpush1.msra.mxu0 0.0
    %2335 = vmatprep.subr.mxu0 0.0
    %2336 = vmatpush1.msra.mxu0 0.0
    %2337 = vmatprep.subr.mxu0 0.0
    %2338 = vmatpush1.msra.mxu0 0.0
    %2339 = vmatprep.subr.mxu0 0.0
    %2340 = vmatpush1.msra.mxu0 0.0
    %2341 = vmatprep.subr.mxu0 0.0
    %2342 = vmatpush1.msra.mxu0 0.0
    %2343 = vmatprep.subr.mxu0 0.0
    %2344 = vmatpush1.msra.mxu0 0.0
    %2345 = vmatprep.subr.mxu0 0.0
    %2346 = vmatpush1.msra.mxu0 0.0
    %2347 = vmatprep.subr.mxu0 0.0
    %2348 = vmatpush1.msra.mxu0 0.0
    %2349 = vmatprep.subr.mxu0 0.0
    %2350 = vmatpush1.msra.mxu0 0.0
    %2351 = vmatprep.subr.mxu0 0.0
    %2352 = vmatpush1.msra.mxu0 0.0
    %2353 = vmatprep.subr.mxu0 0.0
    %2354 = vmatpush1.msra.mxu0 0.0
    %2355 = vmatprep.subr.mxu0 0.0
    %2356 = vmatpush1.msra.mxu0 0.0
    %2357 = vmatprep.subr.mxu0 0.0
    %2358 = vmatpush1.msra.mxu0 0.0
    %2359 = vmatprep.mubr.f32.mxu0 %v2186
    %2360 = vmatmul.mubr.f32.gmra.mrb[0].mxu0 %v1642
    %v2361 = vpop.f32.mrb[0].mxu0
    %v2362 = vadd.f32 %v2162, %v2361
    %v2363 = vpop.f32.mrb[0].mxu0
    %2364 = vmatprep.mubr.f32.mxu0 %v2189
    %2365 = vmatmul.mubr.f32.gmra.mrb[0].mxu0 %v1648
    %v2366 = vpop.f32.mrb[0].mxu0
    %v2367 = vadd.f32 %v2167, %v2366
    %v2368 = vpop.f32.mrb[0].mxu0
    %2369 = vmatprep.mubr.f32.mxu0 %v2192
    %2370 = vmatmul.mubr.f32.gmra.mrb[0].mxu0 %v1654
    %v2371 = vpop.f32.mrb[0].mxu0
    %v2372 = vadd.f32 %v2172, %v2371
    %v2373 = vpop.f32.mrb[0].mxu0
    %2374 = vmatprep.mubr.f32.mxu0 %v2195
    %2375 = vmatmul.mubr.f32.gmra.mrb[0].mxu0 %v1660
    %v2376 = vpop.f32.mrb[0].mxu0
    %v2377 = vadd.f32 %v2177, %v2376
    %v2378 = vpop.f32.mrb[0].mxu0
    %2379 = vmatprep.mubr.f32.mxu0 %v2198
    %2380 = vmatmul.mubr.f32.gmra.mrb[0].mxu0 %v1666
    %v2381 = vpop.f32.mrb[0].mxu0
    %v2382 = vadd.f32 %v2182, %v2381
    %v2383 = vpop.f32.mrb[0].mxu0
    %2384 = vdwg.mxu0
    %2385 = vst [vmem:[%s8] sm:$0xff] %v2267
    %2386 = vst [vmem:[%s8 + $0x8] sm:$0xff] %v2269
    %2387 = vst.msk [vmem:[%s8 + $0x10] sm:$0xff] %vm637, %v2362
    %2388 = vst [vmem:[%s8 + $0x18] sm:$0xff] %v2273
    %2389 = vst [vmem:[%s8 + $0x20] sm:$0xff] %v2275
    %2390 = vst.msk [vmem:[%s8 + $0x28] sm:$0xff] %vm637, %v2367
    %2391 = vst [vmem:[%s8 + $0x30] sm:$0xff] %v2279
    %2392 = vst [vmem:[%s8 + $0x38] sm:$0xff] %v2281
    %2393 = vst.msk [vmem:[%s8 + $0x40] sm:$0xff] %vm637, %v2372
    %2394 = vst [vmem:[%s8 + $0x48] sm:$0xff] %v2285
    %2395 = vst [vmem:[%s8 + $0x50] sm:$0xff] %v2287
    %2396 = vst.msk [vmem:[%s8 + $0x58] sm:$0xff] %vm637, %v2377
    %2397 = vst [vmem:[%s8 + $0x60] sm:$0xf] %v2291
    %2398 = vst [vmem:[%s8 + $0x68] sm:$0xf] %v2293
    %vm2399 = vcmask 257024
    %2400 = vst.msk [vmem:[%s8 + $0x70] sm:$0xf] %vm2399, %v2382
    // Predicated region
    $region42: #{fff_forward.1} parent=1 // pred_check
      _
    $region43: #{fff_forward.1} parent=1 // pred_check_branch
      %2402 = sbr.rel (0) target = $region45
    $region44: #{fff_forward.1} parent=1 // pred_region
      _
    $region45: #{fff_forward.1} parent=1 // pred_fallthru
      _
    // Predicated region
    $region46: #{fff_forward.1} parent=1 // pred_check
      _
    $region47: #{fff_forward.1} parent=1 // pred_check_branch
      %2404 = sbr.rel (0) target = $region49
    $region48: #{fff_forward.1} parent=1 // pred_region
      _
    $region49: #{fff_forward.1} parent=1 // pred_fallthru
      _
    %2405 = vsyncpa [#allocation3], 1
    %2406 = vsyncpa [#allocation5], 1

</llo_original>
